<compile_context>
chip_gen: v7x
topology: tpu7x:2x2x1
jax: 0.10.0
libtpu: 0.0.40
codegen_flags: <defaults>
</compile_context>

<pallas_src>
import functools

import jax
import jax.numpy as jnp
from jax.experimental import pallas as pl
from jax.experimental.pallas import tpu as pltpu

LANE = 128


def _round_up(x, m):
    return ((x + m - 1) // m) * m


def _pick_tile(n_pad, target):
    """Largest multiple of 128 <= target that divides n_pad (n_pad % 128 == 0)."""
    t = max(LANE, min(target, n_pad))
    t = (t // LANE) * LANE
    while n_pad % t:
        t -= LANE
    return t


def _vmem_limit_bytes(tile_n, tile_k, f, h):
    """Double-buffered footprint of one grid step, with headroom, capped for v7x."""
    a = tile_n * tile_k * 2          # bf16 adjacency tile
    x = tile_k * f * 4               # f32 feature K-tile
    w = f * h * 4                    # f32 weight (VMEM-resident per r)
    b = h * 4                        # bias
    o = tile_n * h * 4               # resident f32 output block
    est = 2 * (a + x + w + b + o)    # double buffering
    return int(min(56 * 1024 * 1024, max(16 * 1024 * 1024, 2 * est)))


# ---------------------------------------------------------------------------
# Fused per-layer kernel: out[i] = sum_{r,k} A_hat[r, i, k] @ (X[k] @ W[r])
#                                  + sum_r b[r]        (+ optional ReLU)
# grid = (n_tiles, R, k_tiles); output block resident across (r, k).
# ---------------------------------------------------------------------------
def _rgcn_layer_kernel(a_ref, x_ref, w_ref, b_ref, o_ref, *, apply_relu):
    r = pl.program_id(1)
    k = pl.program_id(2)

    @pl.when((r == 0) & (k == 0))
    def _init():
        o_ref[...] = jnp.zeros_like(o_ref)

    # Fused projection of this K-tile of nodes for relation r (no Z in HBM).
    z = jnp.dot(x_ref[...], w_ref[...], preferred_element_type=jnp.float32)
    # Aggregation: bf16 MXU operands, f32 accumulation into resident output.
    o_ref[...] += jnp.dot(
        a_ref[...], z.astype(jnp.bfloat16), preferred_element_type=jnp.float32
    )

    @pl.when((r == pl.num_programs(1) - 1) & (k == pl.num_programs(2) - 1))
    def _finalize():
        res = o_ref[...] + b_ref[...]
        if apply_relu:
            res = jnp.maximum(res, 0.0)
        o_ref[...] = res


def _rgcn_layer(adj, x, w, b, *, apply_relu, tile_n, tile_k):
    """One HeteroGraphConv(sum) layer on padded, lane-aligned inputs.

    adj: (R, Np, Np) bf16 normalized adjacencies, x: (Np, F) f32,
    w: (R, F, H) f32 (in, out layout -> no in-kernel transpose), b: (R, H).
    Returns (Np, H) float32.
    """
    R, Np, _ = adj.shape
    F = x.shape[1]
    H = w.shape[2]
    n_tiles = Np // tile_n
    k_tiles = Np // tile_k

    bias_sum = jnp.sum(b, axis=0, keepdims=True).astype(jnp.float32)  # (1, H)

    return pl.pallas_call(
        functools.partial(_rgcn_layer_kernel, apply_relu=apply_relu),
        out_shape=jax.ShapeDtypeStruct((Np, H), jnp.float32),
        grid_spec=pltpu.PrefetchScalarGridSpec(
            num_scalar_prefetch=0,
            grid=(n_tiles, R, k_tiles),
            in_specs=[
                pl.BlockSpec((None, tile_n, tile_k), lambda i, r, k: (r, i, k)),
                pl.BlockSpec((tile_k, F), lambda i, r, k: (k, 0)),
                pl.BlockSpec((None, F, H), lambda i, r, k: (r, 0, 0)),
                pl.BlockSpec((1, H), lambda i, r, k: (0, 0)),
            ],
            out_specs=pl.BlockSpec((tile_n, H), lambda i, r, k: (i, 0)),
        ),
        compiler_params=pltpu.CompilerParams(
            dimension_semantics=("parallel", "arbitrary", "arbitrary"),
            vmem_limit_bytes=_vmem_limit_bytes(tile_n, tile_k, F, H),
        ),
    )(adj, x, w, bias_sum)


def _normalized_dense_adj(src, dst, n, n_pad):
    """bf16 D_in^{-1/2} A D_out^{-1/2}, built directly at (n_pad, n_pad)."""
    a = jnp.zeros((n_pad, n_pad), jnp.float32).at[dst, src].add(1.0)
    out_deg = jnp.clip(jnp.sum(a, axis=0), 1.0, None)  # out-degree of source u
    in_deg = jnp.clip(jnp.sum(a, axis=1), 1.0, None)   # in-degree of dest v
    a = a * jax.lax.rsqrt(out_deg)[None, :] * jax.lax.rsqrt(in_deg)[:, None]
    return a.astype(jnp.bfloat16)


@functools.partial(jax.jit, static_argnames=("tile_n", "tile_k"))
def rgcn_forward(x, src_list, dst_list, w1, b1, w2, b2, *, tile_n=1024, tile_k=1024):
    """Pallas implementation of RGCN.forward.

    x:        (N, in_feats) node features (single node type).
    src_list: tuple of R int32 arrays, source node id per edge of relation r.
    dst_list: tuple of R int32 arrays, destination node id per edge.
    w1/b1:    (R, in_feats, hid_feats) / (R, hid_feats)   -- conv1 params.
    w2/b2:    (R, hid_feats, out_feats) / (R, out_feats)  -- conv2 params.
    Returns (N, out_feats) node outputs.
    """
    n, in_f = x.shape
    hid = w1.shape[2]
    out_f = w2.shape[2]

    # Lane-only padding of the node count (no quadratic tile-multiple pads);
    # tiles are chosen as divisors of the padded node count.
    n_pad = _round_up(n, LANE)
    f_pad = _round_up(in_f, LANE)
    h_pad = _round_up(hid, LANE)
    o_pad = _round_up(out_f, LANE)
    tn = _pick_tile(n_pad, tile_n)
    tk = _pick_tile(n_pad, tile_k)

    x_p = jnp.pad(x.astype(jnp.float32), ((0, n_pad - n), (0, f_pad - in_f)))
    w1_p = jnp.pad(w1.astype(jnp.float32), ((0, 0), (0, f_pad - in_f), (0, h_pad - hid)))
    b1_p = jnp.pad(b1.astype(jnp.float32), ((0, 0), (0, h_pad - hid)))
    w2_p = jnp.pad(w2.astype(jnp.float32), ((0, 0), (0, h_pad - hid), (0, o_pad - out_f)))
    b2_p = jnp.pad(b2.astype(jnp.float32), ((0, 0), (0, o_pad - out_f)))

    adj = jnp.stack(
        [_normalized_dense_adj(s, d, n, n_pad) for s, d in zip(src_list, dst_list)]
    )  # (R, Np, Np) bf16

    h = _rgcn_layer(adj, x_p, w1_p, b1_p, apply_relu=True, tile_n=tn, tile_k=tk)
    y = _rgcn_layer(adj, h, w2_p, b2_p, apply_relu=False, tile_n=tn, tile_k=tk)
    return y[:n, :out_f]


# ---------------------------------------------------------------------------
# Pure-JAX reference (ground truth, highest matmul precision)
# ---------------------------------------------------------------------------
def _reference(x, src_list, dst_list, w1, b1, w2, b2):
    n = x.shape[0]
    adjs = []
    for s, d in zip(src_list, dst_list):
        a = jnp.zeros((n, n), jnp.float32).at[d, s].add(1.0)
        outd = jnp.clip(a.sum(0), 1.0, None)
        ind = jnp.clip(a.sum(1), 1.0, None)
        adjs.append(a / jnp.sqrt(outd)[None, :] / jnp.sqrt(ind)[:, None])

    def layer(feat, w, b):
        acc = None
        for r in range(w.shape[0]):
            z = jnp.dot(feat, w[r], precision=jax.lax.Precision.HIGHEST)
            m = jnp.dot(adjs[r], z, precision=jax.lax.Precision.HIGHEST) + b[r]
            acc = m if acc is None else acc + m
        return acc

    h = jax.nn.relu(layer(x, w1, b1))
    return layer(h, w2, b2)


if __name__ == "__main__":
    # Small deterministic setup consistent with RGCN(in_feats, hid_feats,
    # out_feats, rel_names): single node type, R=2 relations.
    in_feats, hid_feats, out_feats = 32, 32, 16
    num_nodes, num_edges, num_rels = 48, 96, 2

    key = jax.random.PRNGKey(0)
    keys = jax.random.split(key, 5 + 2 * num_rels)
    k_x, k_w1, k_w2, k_b1, k_b2 = keys[:5]

    x = jax.random.normal(k_x, (num_nodes, in_feats), dtype=jnp.float32)

    src_list, dst_list = [], []
    for r in range(num_rels):
        src_list.append(
            jax.random.randint(keys[5 + 2 * r], (num_edges,), 0, num_nodes, dtype=jnp.int32))
        dst_list.append(
            jax.random.randint(keys[6 + 2 * r], (num_edges,), 0, num_nodes, dtype=jnp.int32))
    src_list, dst_list = tuple(src_list), tuple(dst_list)

    # dgl.nn.GraphConv stores its weight as (in_feats, out_feats); keep that
    # layout so the kernel consumes the MXU RHS directly (no transpose).
    bound1 = 1.0 / (in_feats ** 0.5)
    bound2 = 1.0 / (hid_feats ** 0.5)
    w1 = jax.random.uniform(k_w1, (num_rels, in_feats, hid_feats),
                            minval=-bound1, maxval=bound1, dtype=jnp.float32)
    b1 = jax.random.uniform(k_b1, (num_rels, hid_feats),
                            minval=-bound1, maxval=bound1, dtype=jnp.float32)
    w2 = jax.random.uniform(k_w2, (num_rels, hid_feats, out_feats),
                            minval=-bound2, maxval=bound2, dtype=jnp.float32)
    b2 = jax.random.uniform(k_b2, (num_rels, out_feats),
                            minval=-bound2, maxval=bound2, dtype=jnp.float32)

    out = rgcn_forward(x, src_list, dst_list, w1, b1, w2, b2)
    out = jax.block_until_ready(out)

    ref = _reference(x, src_list, dst_list, w1, b1, w2, b2)
    assert out.shape == (num_nodes, out_feats)
    err = float(jnp.max(jnp.abs(out - ref)))
    # Tolerance reflects the bf16 adjacency / Z MXU operands (f32 accumulation).
    assert jnp.allclose(out, ref, atol=2e-2, rtol=2e-2), err

    print("KERNEL_OK")
</pallas_src>

<mosaic_0001>
module attributes {stable_mosaic.version = 11 : i64} {
  func.func private @main(%arg0: i32) attributes {dimension_semantics = [#tpu.dimension_semantics<core_parallel>], iteration_bounds = array<i64: 2>, tpu.core_type = #tpu.core_type<sc_scalar_subcore>, window_params = []} {
    return
  }
}

module attributes {stable_mosaic.version = 11 : i64} {
  func.func private @main(%arg0: i32) attributes {dimension_semantics = [#tpu.dimension_semantics<core_parallel>], iteration_bounds = array<i64: 2>, tpu.core_type = #tpu.core_type<sc_scalar_subcore>, window_params = []} {
    return
  }
}

module attributes {stable_mosaic.version = 11 : i64} {
  func.func @_rgcn_layer_kernel(%arg0: i32, %arg1: i32, %arg2: i32, %arg3: memref<1x128x128xbf16, #tpu.memory_space<vmem>>, %arg4: memref<128x128xf32, #tpu.memory_space<vmem>>, %arg5: memref<1x128x128xf32, #tpu.memory_space<vmem>>, %arg6: memref<1x128xf32, #tpu.memory_space<vmem>>, %arg7: memref<128x128xf32, #tpu.memory_space<vmem>>) attributes {dimension_semantics = [#tpu.dimension_semantics<parallel>, #tpu.dimension_semantics<arbitrary>, #tpu.dimension_semantics<arbitrary>], iteration_bounds = array<i64: 1, 2, 1>, scalar_prefetch = 0 : i64, scratch_operands = 0 : i64, tpu.core_type = #tpu.core_type<tc>, window_params = [{transform_indices = @transform_0, window_bounds = array<i64: 1, 128, 128>}, {transform_indices = @transform_1, window_bounds = array<i64: 128, 128>}, {transform_indices = @transform_2, window_bounds = array<i64: 1, 128, 128>}, {pipeline_mode = #tpu.pipeline_mode<synchronous>, transform_indices = @transform_3, window_bounds = array<i64: 1, 128>}, {transform_indices = @transform_4, window_bounds = array<i64: 128, 128>}]} {
    %c0_i32 = arith.constant 0 : i32
    %0 = arith.cmpi eq, %arg1, %c0_i32 : i32
    %c0_i32_0 = arith.constant 0 : i32
    %1 = arith.cmpi eq, %arg2, %c0_i32_0 : i32
    %2 = arith.andi %0, %1 : i1
    %3 = arith.extui %2 : i1 to i32
    %c0_i32_1 = arith.constant 0 : i32
    %4 = arith.cmpi ne, %3, %c0_i32_1 : i32
    scf.if %4 {
      %cst_16 = arith.constant 0.000000e+00 : f32
      %21 = vector.broadcast %cst_16 : f32 to vector<128x128xf32>
      %c0_17 = arith.constant 0 : index
      %c0_18 = arith.constant 0 : index
      %22 = vector.load %arg7[%c0_17, %c0_18] : memref<128x128xf32, #tpu.memory_space<vmem>>, vector<128x128xf32>
      tpu.vector_store %arg7[%c0_17, %c0_18], %21 {strides = array<i32>} : memref<128x128xf32, #tpu.memory_space<vmem>>, vector<128x128xf32>,
    } else {
    }
    %c0 = arith.constant 0 : index
    %c0_2 = arith.constant 0 : index
    %5 = vector.load %arg4[%c0, %c0_2] : memref<128x128xf32, #tpu.memory_space<vmem>>, vector<128x128xf32>
    %c0_3 = arith.constant 0 : index
    %c0_4 = arith.constant 0 : index
    %c0_5 = arith.constant 0 : index
    %6 = vector.load %arg5[%c0_3, %c0_4, %c0_5] : memref<1x128x128xf32, #tpu.memory_space<vmem>>, vector<1x128x128xf32>
    %7 = vector.shape_cast %6 : vector<1x128x128xf32> to vector<128x128xf32>
    %cst = arith.constant dense<0.000000e+00> : vector<128x128xf32>
    %8 = tpu.matmul %5, %7, %cst {dimension_numbers = #tpu.dot_dimension_numbers<[1], [0], [0], [1], [0, 0, 1, 1], [], []>} : vector<128x128xf32>, vector<128x128xf32>, vector<128x128xf32> -> vector<128x128xf32>
    %c0_6 = arith.constant 0 : index
    %c0_7 = arith.constant 0 : index
    %9 = vector.load %arg7[%c0_6, %c0_7] : memref<128x128xf32, #tpu.memory_space<vmem>>, vector<128x128xf32>
    %c0_8 = arith.constant 0 : index
    %c0_9 = arith.constant 0 : index
    %c0_10 = arith.constant 0 : index
    %10 = vector.load %arg3[%c0_8, %c0_9, %c0_10] : memref<1x128x128xbf16, #tpu.memory_space<vmem>>, vector<1x128x128xbf16>
    %11 = vector.shape_cast %10 : vector<1x128x128xbf16> to vector<128x128xbf16>
    %12 = arith.truncf %8 : vector<128x128xf32> to vector<128x128xbf16>
    %cst_11 = arith.constant dense<0.000000e+00> : vector<128x128xf32>
    %13 = tpu.matmul %11, %12, %cst_11 {dimension_numbers = #tpu.dot_dimension_numbers<[1], [0], [0], [1], [0, 0, 1, 1], [], []>} : vector<128x128xbf16>, vector<128x128xbf16>, vector<128x128xf32> -> vector<128x128xf32>
    %14 = arith.addf %9, %13 : vector<128x128xf32>
    %c0_12 = arith.constant 0 : index
    %c0_13 = arith.constant 0 : index
    %15 = vector.load %arg7[%c0_12, %c0_13] : memref<128x128xf32, #tpu.memory_space<vmem>>, vector<128x128xf32>
    tpu.vector_store %arg7[%c0_12, %c0_13], %14 {strides = array<i32>} : memref<128x128xf32, #tpu.memory_space<vmem>>, vector<128x128xf32>,
    %c1_i32 = arith.constant 1 : i32
    %16 = arith.cmpi eq, %arg1, %c1_i32 : i32
    %c0_i32_14 = arith.constant 0 : i32
    %17 = arith.cmpi eq, %arg2, %c0_i32_14 : i32
    %18 = arith.andi %16, %17 : i1
    %19 = arith.extui %18 : i1 to i32
    %c0_i32_15 = arith.constant 0 : i32
    %20 = arith.cmpi ne, %19, %c0_i32_15 : i32
    scf.if %20 {
      %c0_16 = arith.constant 0 : index
      %c0_17 = arith.constant 0 : index
      %21 = vector.load %arg7[%c0_16, %c0_17] : memref<128x128xf32, #tpu.memory_space<vmem>>, vector<128x128xf32>
      %c0_18 = arith.constant 0 : index
      %c0_19 = arith.constant 0 : index
      %22 = vector.load %arg6[%c0_18, %c0_19] : memref<1x128xf32, #tpu.memory_space<vmem>>, vector<1x128xf32>
      %23 = vector.broadcast %22 : vector<1x128xf32> to vector<128x128xf32>
      %24 = arith.addf %21, %23 : vector<128x128xf32>
      %cst_20 = arith.constant 0.000000e+00 : f32
      %25 = vector.broadcast %cst_20 : f32 to vector<128x128xf32>
      %26 = arith.maximumf %24, %25 : vector<128x128xf32>
      %c0_21 = arith.constant 0 : index
      %c0_22 = arith.constant 0 : index
      %27 = vector.load %arg7[%c0_21, %c0_22] : memref<128x128xf32, #tpu.memory_space<vmem>>, vector<128x128xf32>
      tpu.vector_store %arg7[%c0_21, %c0_22], %26 {strides = array<i32>} : memref<128x128xf32, #tpu.memory_space<vmem>>, vector<128x128xf32>,
    } else {
    }
    return
  }
  func.func @transform_0(%arg0: i32, %arg1: i32, %arg2: i32) -> (i32, i32, i32) {
    %c0_i32 = arith.constant 0 : i32
    return %arg1, %arg0, %arg2 : i32, i32, i32
  }
  func.func @transform_1(%arg0: i32, %arg1: i32, %arg2: i32) -> (i32, i32) {
    %c0_i32 = arith.constant 0 : i32
    %c0_i32_0 = arith.constant 0 : i32
    return %arg2, %c0_i32 : i32, i32
  }
  func.func @transform_2(%arg0: i32, %arg1: i32, %arg2: i32) -> (i32, i32, i32) {
    %c0_i32 = arith.constant 0 : i32
    %c0_i32_0 = arith.constant 0 : i32
    %c0_i32_1 = arith.constant 0 : i32
    return %arg1, %c0_i32, %c0_i32_0 : i32, i32, i32
  }
  func.func @transform_3(%arg0: i32, %arg1: i32, %arg2: i32) -> (i32, i32) {
    %c0_i32 = arith.constant 0 : i32
    %c0_i32_0 = arith.constant 0 : i32
    %c0_i32_1 = arith.constant 0 : i32
    return %c0_i32, %c0_i32_0 : i32, i32
  }
  func.func @transform_4(%arg0: i32, %arg1: i32, %arg2: i32) -> (i32, i32) {
    %c0_i32 = arith.constant 0 : i32
    %c0_i32_0 = arith.constant 0 : i32
    return %arg0, %c0_i32 : i32, i32
  }
}

module attributes {stable_mosaic.version = 11 : i64} {
  func.func @_rgcn_layer_kernel(%arg0: i32, %arg1: i32, %arg2: i32, %arg3: memref<1x128x128xbf16, #tpu.memory_space<vmem>>, %arg4: memref<128x128xf32, #tpu.memory_space<vmem>>, %arg5: memref<1x128x128xf32, #tpu.memory_space<vmem>>, %arg6: memref<1x128xf32, #tpu.memory_space<vmem>>, %arg7: memref<128x128xf32, #tpu.memory_space<vmem>>) attributes {dimension_semantics = [#tpu.dimension_semantics<parallel>, #tpu.dimension_semantics<arbitrary>, #tpu.dimension_semantics<arbitrary>], iteration_bounds = array<i64: 1, 2, 1>, scalar_prefetch = 0 : i64, scratch_operands = 0 : i64, tpu.core_type = #tpu.core_type<tc>, window_params = [{transform_indices = @transform_0, window_bounds = array<i64: 1, 128, 128>}, {transform_indices = @transform_1, window_bounds = array<i64: 128, 128>}, {transform_indices = @transform_2, window_bounds = array<i64: 1, 128, 128>}, {pipeline_mode = #tpu.pipeline_mode<synchronous>, transform_indices = @transform_3, window_bounds = array<i64: 1, 128>}, {transform_indices = @transform_4, window_bounds = array<i64: 128, 128>}]} {
    %c0_i32 = arith.constant 0 : i32
    %0 = arith.cmpi eq, %arg1, %c0_i32 : i32
    %c0_i32_0 = arith.constant 0 : i32
    %1 = arith.cmpi eq, %arg2, %c0_i32_0 : i32
    %2 = arith.andi %0, %1 : i1
    %3 = arith.extui %2 : i1 to i32
    %c0_i32_1 = arith.constant 0 : i32
    %4 = arith.cmpi ne, %3, %c0_i32_1 : i32
    scf.if %4 {
      %cst_16 = arith.constant 0.000000e+00 : f32
      %21 = vector.broadcast %cst_16 : f32 to vector<128x128xf32>
      %c0_17 = arith.constant 0 : index
      %c0_18 = arith.constant 0 : index
      %22 = vector.load %arg7[%c0_17, %c0_18] : memref<128x128xf32, #tpu.memory_space<vmem>>, vector<128x128xf32>
      tpu.vector_store %arg7[%c0_17, %c0_18], %21 {strides = array<i32>} : memref<128x128xf32, #tpu.memory_space<vmem>>, vector<128x128xf32>,
    } else {
    }
    %c0 = arith.constant 0 : index
    %c0_2 = arith.constant 0 : index
    %5 = vector.load %arg4[%c0, %c0_2] : memref<128x128xf32, #tpu.memory_space<vmem>>, vector<128x128xf32>
    %c0_3 = arith.constant 0 : index
    %c0_4 = arith.constant 0 : index
    %c0_5 = arith.constant 0 : index
    %6 = vector.load %arg5[%c0_3, %c0_4, %c0_5] : memref<1x128x128xf32, #tpu.memory_space<vmem>>, vector<1x128x128xf32>
    %7 = vector.shape_cast %6 : vector<1x128x128xf32> to vector<128x128xf32>
    %cst = arith.constant dense<0.000000e+00> : vector<128x128xf32>
    %8 = tpu.matmul %5, %7, %cst {dimension_numbers = #tpu.dot_dimension_numbers<[1], [0], [0], [1], [0, 0, 1, 1], [], []>} : vector<128x128xf32>, vector<128x128xf32>, vector<128x128xf32> -> vector<128x128xf32>
    %c0_6 = arith.constant 0 : index
    %c0_7 = arith.constant 0 : index
    %9 = vector.load %arg7[%c0_6, %c0_7] : memref<128x128xf32, #tpu.memory_space<vmem>>, vector<128x128xf32>
    %c0_8 = arith.constant 0 : index
    %c0_9 = arith.constant 0 : index
    %c0_10 = arith.constant 0 : index
    %10 = vector.load %arg3[%c0_8, %c0_9, %c0_10] : memref<1x128x128xbf16, #tpu.memory_space<vmem>>, vector<1x128x128xbf16>
    %11 = vector.shape_cast %10 : vector<1x128x128xbf16> to vector<128x128xbf16>
    %12 = arith.truncf %8 : vector<128x128xf32> to vector<128x128xbf16>
    %cst_11 = arith.constant dense<0.000000e+00> : vector<128x128xf32>
    %13 = tpu.matmul %11, %12, %cst_11 {dimension_numbers = #tpu.dot_dimension_numbers<[1], [0], [0], [1], [0, 0, 1, 1], [], []>} : vector<128x128xbf16>, vector<128x128xbf16>, vector<128x128xf32> -> vector<128x128xf32>
    %14 = arith.addf %9, %13 : vector<128x128xf32>
    %c0_12 = arith.constant 0 : index
    %c0_13 = arith.constant 0 : index
    %15 = vector.load %arg7[%c0_12, %c0_13] : memref<128x128xf32, #tpu.memory_space<vmem>>, vector<128x128xf32>
    tpu.vector_store %arg7[%c0_12, %c0_13], %14 {strides = array<i32>} : memref<128x128xf32, #tpu.memory_space<vmem>>, vector<128x128xf32>,
    %c1_i32 = arith.constant 1 : i32
    %16 = arith.cmpi eq, %arg1, %c1_i32 : i32
    %c0_i32_14 = arith.constant 0 : i32
    %17 = arith.cmpi eq, %arg2, %c0_i32_14 : i32
    %18 = arith.andi %16, %17 : i1
    %19 = arith.extui %18 : i1 to i32
    %c0_i32_15 = arith.constant 0 : i32
    %20 = arith.cmpi ne, %19, %c0_i32_15 : i32
    scf.if %20 {
      %c0_16 = arith.constant 0 : index
      %c0_17 = arith.constant 0 : index
      %21 = vector.load %arg7[%c0_16, %c0_17] : memref<128x128xf32, #tpu.memory_space<vmem>>, vector<128x128xf32>
      %c0_18 = arith.constant 0 : index
      %c0_19 = arith.constant 0 : index
      %22 = vector.load %arg6[%c0_18, %c0_19] : memref<1x128xf32, #tpu.memory_space<vmem>>, vector<1x128xf32>
      %23 = vector.broadcast %22 : vector<1x128xf32> to vector<128x128xf32>
      %24 = arith.addf %21, %23 : vector<128x128xf32>
      %c0_20 = arith.constant 0 : index
      %c0_21 = arith.constant 0 : index
      %25 = vector.load %arg7[%c0_20, %c0_21] : memref<128x128xf32, #tpu.memory_space<vmem>>, vector<128x128xf32>
      tpu.vector_store %arg7[%c0_20, %c0_21], %24 {strides = array<i32>} : memref<128x128xf32, #tpu.memory_space<vmem>>, vector<128x128xf32>,
    } else {
    }
    return
  }
  func.func @transform_0(%arg0: i32, %arg1: i32, %arg2: i32) -> (i32, i32, i32) {
    %c0_i32 = arith.constant 0 : i32
    return %arg1, %arg0, %arg2 : i32, i32, i32
  }
  func.func @transform_1(%arg0: i32, %arg1: i32, %arg2: i32) -> (i32, i32) {
    %c0_i32 = arith.constant 0 : i32
    %c0_i32_0 = arith.constant 0 : i32
    return %arg2, %c0_i32 : i32, i32
  }
  func.func @transform_2(%arg0: i32, %arg1: i32, %arg2: i32) -> (i32, i32, i32) {
    %c0_i32 = arith.constant 0 : i32
    %c0_i32_0 = arith.constant 0 : i32
    %c0_i32_1 = arith.constant 0 : i32
    return %arg1, %c0_i32, %c0_i32_0 : i32, i32, i32
  }
  func.func @transform_3(%arg0: i32, %arg1: i32, %arg2: i32) -> (i32, i32) {
    %c0_i32 = arith.constant 0 : i32
    %c0_i32_0 = arith.constant 0 : i32
    %c0_i32_1 = arith.constant 0 : i32
    return %c0_i32, %c0_i32_0 : i32, i32
  }
  func.func @transform_4(%arg0: i32, %arg1: i32, %arg2: i32) -> (i32, i32) {
    %c0_i32 = arith.constant 0 : i32
    %c0_i32_0 = arith.constant 0 : i32
    return %arg0, %c0_i32 : i32, i32
  }
}

</mosaic_0001>

<llo_original>
// kernel: rgcn_forward.2
$region0: #{rgcn_forward.2}
  #allocation0 [shape = 'u32[]', space=smem, size = 0x4, offset = 0x4, fixed_abs, tag = 'smem constant byte address 0x4 - core index']
  #allocation1 [shape = 'u32[144,128]{1,0:T(1,128)}', space=vmem, size = 0x12000, scoped, tag = 'internal scratch']
  %s0 = inlined_call_operand.vmem [shape: bf16[2,128,128], index: 0, kind: input, shape index: {}]
  %s1 = inlined_call_operand.vmem [shape: f32[128,128], index: 1, kind: input, shape index: {}]
  %s2 = inlined_call_operand.vmem [shape: f32[2,128,128], index: 2, kind: input, shape index: {}]
  %s3 = inlined_call_operand.vmem [shape: f32[1,128], index: 3, kind: input, shape index: {}]
  %s4 = inlined_call_operand.vmem [shape: f32[128,128], index: 4, kind: output, shape index: {}]
  %s5 = sld [smem:[#allocation0]]
  $region57: #{rgcn_forward.2} parent=0
    _
  %s7 = ssub.s32 1, %s5
  %s8 = scalar_select 0, %s7, %s5
  loop: start=0, step=1, limit=4
  $region2: #{rgcn_forward.2} parent=0 // loop_pre_header
    _
  $region3: #{rgcn_forward.2} parent=0 // loop_header
    %s10 = sphi 0, %s14
    %p11 = scmp.ge.s32.totalorder %s10, 4
    %s17 = sphi 0, %s36
    %s18 = sphi 0, %s32
    %s19 = sphi 0, %s28
    %s20 = sphi 0, %s17
    %s21 = sphi 0, %s18
    %s22 = sphi 0, %s19
    %s23 = sphi 0, %s20
    %s24 = sphi 0, %s21
    %s25 = sphi 0, %s22
    %s43 = sphi 0, %s45
    %s46 = sphi 0, %s43
    %s47 = sphi 0, %s46
    %s63 = sphi 0, %s47
    %s69 = sphi 0, %s71
    %s72 = sphi 0, %s69
    %s73 = sphi 0, %s72
    %s89 = sphi 0, %s73
    %s95 = sphi 0, %s97
    %s98 = sphi 0, %s95
    %s99 = sphi 0, %s98
    %s115 = sphi 0, %s99
    %s119 = sphi 0, %s119
    %s121 = sphi 0, %s119
    %s122 = sphi 0, %s121
    %s136 = sphi 0, %s122
    %s142 = sphi 0, %s144
    %s145 = sphi 0, %s142
    %s146 = sphi 0, %s145
    %s162 = sphi 0, %s146
  $region4: #{rgcn_forward.2} parent=0 // loop_header_branch
    %13 = sbr.rel (%p11) target = $region8
  $region5: #{rgcn_forward.2} parent=0 // loop_body
    %s15 = ssub.s32 %s10, 1
    %s16 = ssub.s32 %s10, 2
    %s26 = sadd.s32 1, %s19
    %p27 = scmp.ge.s32.totalorder %s26, 1
    %s28 = scalar_select %p27, 0, %s26
    %s29 = sadd.s32 1, %s18
    %s30 = scalar_select %p27, %s29, %s18
    %p31 = scmp.ge.s32.totalorder %s30, 2
    %s32 = scalar_select %p31, 0, %s30
    %s33 = sadd.s32 1, %s17
    %s34 = scalar_select %p31, %s33, %s17
    %p35 = scmp.ge.s32.totalorder %s34, 1
    %s36 = scalar_select %p35, 0, %s34
    %s37 = ssub.s32 %s18, %s32
    %s38 = ssub.s32 %s17, %s36
    %s39 = sor.u32 %s37, %s38
    %s40 = ssub.s32 %s19, %s28
    %s41 = sor.u32 %s39, %s40
    %p42 = scmp.eq.s32.totalorder %s41, 0
    %s44 = sadd.s32 %s43, 1
    %s45 = scalar_select %p42, %s43, %s44
    %p48 = pneg %p42
    %p49 = scmp.eq.s32.totalorder %s10, 1
    %p50 = por %p48, %p49
    %p51 = scmp.ne.s32.totalorder %s43, %s46
    %p52 = scmp.eq.s32.totalorder %s10, 0
    %p53 = por %p51, %p52
    %p54 = scmp.ne.s32.totalorder %s43, %s46
    %p55 = scmp.eq.s32.totalorder %s15, 1
    %p56 = por %p54, %p55
    %p57 = scmp.ne.s32.totalorder %s46, %s47
    %p58 = scmp.eq.s32.totalorder %s15, 0
    %p59 = por %p57, %p58
    %p60 = scmp.ne.s32.totalorder %s46, %s47
    %p61 = scmp.eq.s32.totalorder %s16, 1
    %p62 = por %p60, %p61
    %p64 = scmp.ne.s32.totalorder %s47, %s63
    %p65 = scmp.eq.s32.totalorder %s16, 0
    %p66 = por %p64, %p65
    %s67 = ssub.s32 %s19, %s28
    %p68 = scmp.eq.s32.totalorder %s67, 0
    %s70 = sadd.s32 %s69, 1
    %s71 = scalar_select %p68, %s69, %s70
    %p74 = pneg %p68
    %p75 = scmp.eq.s32.totalorder %s10, 1
    %p76 = por %p74, %p75
    %p77 = scmp.ne.s32.totalorder %s69, %s72
    %p78 = scmp.eq.s32.totalorder %s10, 0
    %p79 = por %p77, %p78
    %p80 = scmp.ne.s32.totalorder %s69, %s72
    %p81 = scmp.eq.s32.totalorder %s15, 1
    %p82 = por %p80, %p81
    %p83 = scmp.ne.s32.totalorder %s72, %s73
    %p84 = scmp.eq.s32.totalorder %s15, 0
    %p85 = por %p83, %p84
    %p86 = scmp.ne.s32.totalorder %s72, %s73
    %p87 = scmp.eq.s32.totalorder %s16, 1
    %p88 = por %p86, %p87
    %p90 = scmp.ne.s32.totalorder %s73, %s89
    %p91 = scmp.eq.s32.totalorder %s16, 0
    %p92 = por %p90, %p91
    %s93 = ssub.s32 %s18, %s32
    %p94 = scmp.eq.s32.totalorder %s93, 0
    %s96 = sadd.s32 %s95, 1
    %s97 = scalar_select %p94, %s95, %s96
    %p100 = pneg %p94
    %p101 = scmp.eq.s32.totalorder %s10, 1
    %p102 = por %p100, %p101
    %p103 = scmp.ne.s32.totalorder %s95, %s98
    %p104 = scmp.eq.s32.totalorder %s10, 0
    %p105 = por %p103, %p104
    %p106 = scmp.ne.s32.totalorder %s95, %s98
    %p107 = scmp.eq.s32.totalorder %s15, 1
    %p108 = por %p106, %p107
    %p109 = scmp.ne.s32.totalorder %s98, %s99
    %p110 = scmp.eq.s32.totalorder %s15, 0
    %p111 = por %p109, %p110
    %p112 = scmp.ne.s32.totalorder %s98, %s99
    %p113 = scmp.eq.s32.totalorder %s16, 1
    %p114 = por %p112, %p113
    %p116 = scmp.ne.s32.totalorder %s99, %s115
    %p117 = scmp.eq.s32.totalorder %s16, 0
    %p118 = por %p116, %p117
    %s120 = sadd.s32 %s119, 1
    %p123 = scmp.eq.s32.totalorder %s10, 1
    %p124 = scmp.ne.s32.totalorder %s119, %s121
    %p125 = scmp.eq.s32.totalorder %s10, 0
    %p126 = por %p124, %p125
    %p127 = scmp.ne.s32.totalorder %s119, %s121
    %p128 = scmp.eq.s32.totalorder %s15, 1
    %p129 = por %p127, %p128
    %p130 = scmp.ne.s32.totalorder %s121, %s122
    %p131 = scmp.eq.s32.totalorder %s15, 0
    %p132 = por %p130, %p131
    %p133 = scmp.ne.s32.totalorder %s121, %s122
    %p134 = scmp.eq.s32.totalorder %s16, 1
    %p135 = por %p133, %p134
    %p137 = scmp.ne.s32.totalorder %s122, %s136
    %p138 = scmp.eq.s32.totalorder %s16, 0
    %p139 = por %p137, %p138
    %s140 = ssub.s32 %s17, %s36
    %p141 = scmp.eq.s32.totalorder %s140, 0
    %s143 = sadd.s32 %s142, 1
    %s144 = scalar_select %p141, %s142, %s143
    %p147 = pneg %p141
    %p148 = scmp.eq.s32.totalorder %s10, 1
    %p149 = por %p147, %p148
    %p150 = scmp.ne.s32.totalorder %s142, %s145
    %p151 = scmp.eq.s32.totalorder %s10, 0
    %p152 = por %p150, %p151
    %p153 = scmp.ne.s32.totalorder %s142, %s145
    %p154 = scmp.eq.s32.totalorder %s15, 1
    %p155 = por %p153, %p154
    %p156 = scmp.ne.s32.totalorder %s145, %s146
    %p157 = scmp.eq.s32.totalorder %s15, 0
    %p158 = por %p156, %p157
    %p159 = scmp.ne.s32.totalorder %s145, %s146
    %p160 = scmp.eq.s32.totalorder %s16, 1
    %p161 = por %p159, %p160
    %p163 = scmp.ne.s32.totalorder %s146, %s162
    %p164 = scmp.eq.s32.totalorder %s16, 0
    %p165 = por %p163, %p164
    %p166 = scmp.le.s32.totalorder 1, %s10
    %p167 = scmp.lt.s32.totalorder %s10, 3
    %p168 = pnand %p166, %p167
    %p169 = pneg %p168
    // Predicated region
    $region9: #{rgcn_forward.2} parent=5 // pred_check
      _
    $region10: #{rgcn_forward.2} parent=5 // pred_check_branch
      %171 = sbr.rel (%p168) target = $region12
    $region11: #{rgcn_forward.2} parent=5 // pred_region
      %s172 = ssub.s32 %s10, 1
      // Predicated region
      $region13: #{rgcn_forward.2} parent=11 // pred_check
        %p173 = pneg %p85
      $region14: #{rgcn_forward.2} parent=11 // pred_check_branch
        %175 = sbr.rel (%p173) target = $region16
      $region15: #{rgcn_forward.2} parent=11 // pred_region
        %s176 = smul.u32 16, %s22
        %p177 = scmp.lt.s32.totalorder %s176, 15
        %s178 = scalar_select %p177, %s176, 15
        %s179 = smul.addr %s178, 8
        %s180 = scalar_lea.vmem %s1, %s179
        %s181 = smul.u32 16, %s22
      $region16: #{rgcn_forward.2} parent=11 // pred_fallthru
        _
      // Predicated region
      $region17: #{rgcn_forward.2} parent=11 // pred_check
        %p182 = pneg %p132
      $region18: #{rgcn_forward.2} parent=11 // pred_check_branch
        %184 = sbr.rel (%p182) target = $region20
      $region19: #{rgcn_forward.2} parent=11 // pred_region
        _
      $region20: #{rgcn_forward.2} parent=11 // pred_fallthru
        _
    $region12: #{rgcn_forward.2} parent=5 // pred_fallthru
      _
    %p185 = scmp.lt.s32.totalorder %s10, 2
    // Predicated region
    $region21: #{rgcn_forward.2} parent=5 // pred_check
      %p186 = pneg %p185
    $region22: #{rgcn_forward.2} parent=5 // pred_check_branch
      %188 = sbr.rel (%p186) target = $region24
    $region23: #{rgcn_forward.2} parent=5 // pred_region
      // Predicated region
      $region25: #{rgcn_forward.2} parent=23 // pred_check
        %p189 = pneg %p53
      $region26: #{rgcn_forward.2} parent=23 // pred_check_branch
        %191 = sbr.rel (%p189) target = $region28
      $region27: #{rgcn_forward.2} parent=23 // pred_region
        %s192 = smul.u32 16, %s17
        %p193 = scmp.lt.s32.totalorder %s18, 1
        %s194 = scalar_select %p193, %s18, 1
        %p195 = scmp.lt.s32.totalorder %s192, 15
        %s196 = scalar_select %p195, %s192, 15
        %p197 = scmp.lt.s32.totalorder %s19, 0
        %s198 = scalar_select %p197, %s19, 0
        %s199 = sadd.s32 %s198, %s196
        %s200 = smul.addr %s194, 16
        %s201 = sadd.s32 %s199, %s200
        %s202 = smul.addr %s201, 4
        %s203 = scalar_lea.vmem %s0, %s202
        %s204 = smul.u32 16, %s17
      $region28: #{rgcn_forward.2} parent=23 // pred_fallthru
        _
      // Predicated region
      $region29: #{rgcn_forward.2} parent=23 // pred_check
        %p205 = pneg %p105
      $region30: #{rgcn_forward.2} parent=23 // pred_check_branch
        %207 = sbr.rel (%p205) target = $region32
      $region31: #{rgcn_forward.2} parent=23 // pred_region
        %p208 = scmp.lt.s32.totalorder %s18, 1
        %s209 = scalar_select %p208, %s18, 1
        %s210 = smul.addr %s209, 16
        %s211 = smul.addr %s210, 8
        %s212 = scalar_lea.vmem %s2, %s211
      $region32: #{rgcn_forward.2} parent=23 // pred_fallthru
        _
    $region24: #{rgcn_forward.2} parent=5 // pred_fallthru
      _
    %p213 = scmp.le.s32.totalorder 1, %s10
    %p214 = scmp.lt.s32.totalorder %s10, 3
    %p215 = pnand %p213, %p214
    %p216 = pneg %p215
    // Predicated region
    $region33: #{rgcn_forward.2} parent=5 // pred_check
      _
    $region34: #{rgcn_forward.2} parent=5 // pred_check_branch
      %218 = sbr.rel (%p215) target = $region36
    $region35: #{rgcn_forward.2} parent=5 // pred_region
      %s219 = ssub.s32 %s10, 1
      %s220 = smul.u32 16, %s20
      %p221 = scmp.lt.s32.totalorder %s21, 1
      %s222 = scalar_select %p221, %s21, 1
      %p223 = scmp.lt.s32.totalorder %s220, 15
      %s224 = scalar_select %p223, %s220, 15
      %p225 = scmp.lt.s32.totalorder %s22, 0
      %s226 = scalar_select %p225, %s22, 0
      %s227 = sadd.s32 %s226, %s224
      %s228 = smul.addr %s222, 16
      %s229 = sadd.s32 %s227, %s228
      %s230 = smul.addr %s229, 4
      %s231 = scalar_lea.vmem %s0, %s230
      %p232 = pneg %p59
      %p233 = pneg %p56
      %s234 = smul.u32 16, %s22
      %p235 = scmp.lt.s32.totalorder %s234, 15
      %s236 = scalar_select %p235, %s234, 15
      %s237 = smul.addr %s236, 8
      %s238 = scalar_lea.vmem %s1, %s237
      %p239 = pneg %p85
      %p240 = pneg %p82
      %p241 = scmp.lt.s32.totalorder %s21, 1
      %s242 = scalar_select %p241, %s21, 1
      %s243 = smul.addr %s242, 16
      %s244 = smul.addr %s243, 8
      %s245 = scalar_lea.vmem %s2, %s244
      %p246 = pneg %p111
      %p247 = pneg %p108
      %p248 = pneg %p132
      %p249 = pneg %p129
      %p250 = pneg %p158
      %p251 = pneg %p155
      %s252 = smul.u32 16, %s20
      %p253 = scmp.lt.s32.totalorder %s252, 15
      %s254 = scalar_select %p253, %s252, 15
      %s255 = smul.addr %s254, 8
      %s256 = scalar_lea.vmem %s4, %s255
      %s257 = smul.u32 16, %s20
      %p258 = scmp.lt.s32.totalorder %s21, 1
      %s259 = scalar_select %p258, %s21, 1
      %p260 = scmp.lt.s32.totalorder %s257, 15
      %s261 = scalar_select %p260, %s257, 15
      %p262 = scmp.lt.s32.totalorder %s22, 0
      %s263 = scalar_select %p262, %s22, 0
      %s264 = sadd.s32 %s263, %s261
      %s265 = smul.addr %s259, 16
      %s266 = sadd.s32 %s264, %s265
      %s267 = smul.addr %s266, 4
      %s268 = scalar_lea.vmem %s0, %s267
      %s269 = smul.u32 16, %s20
      %s270 = smul.u32 16, %s22
      %p271 = scmp.lt.s32.totalorder %s270, 15
      %s272 = scalar_select %p271, %s270, 15
      %s273 = smul.addr %s272, 8
      %s274 = scalar_lea.vmem %s1, %s273
      %s275 = smul.u32 16, %s22
      %p276 = scmp.lt.s32.totalorder %s21, 1
      %s277 = scalar_select %p276, %s21, 1
      %s278 = smul.addr %s277, 16
      %s279 = smul.addr %s278, 8
      %s280 = scalar_lea.vmem %s2, %s279
      %s281 = smul.u32 16, %s20
      %p282 = scmp.lt.s32.totalorder %s281, 15
      %s283 = scalar_select %p282, %s281, 15
      %s284 = smul.addr %s283, 8
      %s285 = scalar_lea.vmem %s4, %s284
      %s286 = smul.u32 16, %s20
      %p288 = scmp.eq.s32.totalorder %s21, 0
      %p289 = scmp.eq.s32.totalorder %s22, 0
      %p290 = pnand %p288, %p289
      %p291 = pneg %p290
      // Predicated region
      $region37: #{rgcn_forward.2} parent=35 // pred_check
        _
      $region38: #{rgcn_forward.2} parent=35 // pred_check_branch
        %293 = sbr.rel (%p290) target = $region40
      $region39: #{rgcn_forward.2} parent=35 // pred_region
        %294 = vst [vmem:[%s285] sm:$0xff] 0.0
        %295 = vst [vmem:[%s285 + $0x8] sm:$0xff] 0.0
        %296 = vst [vmem:[%s285 + $0x10] sm:$0xff] 0.0
        %297 = vst [vmem:[%s285 + $0x18] sm:$0xff] 0.0
        %298 = vst [vmem:[%s285 + $0x20] sm:$0xff] 0.0
        %299 = vst [vmem:[%s285 + $0x28] sm:$0xff] 0.0
        %300 = vst [vmem:[%s285 + $0x30] sm:$0xff] 0.0
        %301 = vst [vmem:[%s285 + $0x38] sm:$0xff] 0.0
        %302 = vst [vmem:[%s285 + $0x40] sm:$0xff] 0.0
        %303 = vst [vmem:[%s285 + $0x48] sm:$0xff] 0.0
        %304 = vst [vmem:[%s285 + $0x50] sm:$0xff] 0.0
        %305 = vst [vmem:[%s285 + $0x58] sm:$0xff] 0.0
        %306 = vst [vmem:[%s285 + $0x60] sm:$0xff] 0.0
        %307 = vst [vmem:[%s285 + $0x68] sm:$0xff] 0.0
        %308 = vst [vmem:[%s285 + $0x70] sm:$0xff] 0.0
        %309 = vst [vmem:[%s285 + $0x78] sm:$0xff] 0.0
      $region40: #{rgcn_forward.2} parent=35 // pred_fallthru
        _
      %v310 = vld [vmem:[%s274] sm:$0xff]
      %v311 = vld [vmem:[%s274 + $0x8] sm:$0xff]
      %v312 = vld [vmem:[%s274 + $0x10] sm:$0xff]
      %v313 = vld [vmem:[%s274 + $0x18] sm:$0xff]
      %v314 = vld [vmem:[%s274 + $0x20] sm:$0xff]
      %v315 = vld [vmem:[%s274 + $0x28] sm:$0xff]
      %v316 = vld [vmem:[%s274 + $0x30] sm:$0xff]
      %v317 = vld [vmem:[%s274 + $0x38] sm:$0xff]
      %v318 = vld [vmem:[%s274 + $0x40] sm:$0xff]
      %v319 = vld [vmem:[%s274 + $0x48] sm:$0xff]
      %v320 = vld [vmem:[%s274 + $0x50] sm:$0xff]
      %v321 = vld [vmem:[%s274 + $0x58] sm:$0xff]
      %v322 = vld [vmem:[%s274 + $0x60] sm:$0xff]
      %v323 = vld [vmem:[%s274 + $0x68] sm:$0xff]
      %v324 = vld [vmem:[%s274 + $0x70] sm:$0xff]
      %v325 = vld [vmem:[%s274 + $0x78] sm:$0xff]
      %v326 = vld [vmem:[%s280] sm:$0xff]
      %v327 = vld [vmem:[%s280 + $0x8] sm:$0xff]
      %v328 = vld [vmem:[%s280 + $0x10] sm:$0xff]
      %v329 = vld [vmem:[%s280 + $0x18] sm:$0xff]
      %v330 = vld [vmem:[%s280 + $0x20] sm:$0xff]
      %v331 = vld [vmem:[%s280 + $0x28] sm:$0xff]
      %v332 = vld [vmem:[%s280 + $0x30] sm:$0xff]
      %v333 = vld [vmem:[%s280 + $0x38] sm:$0xff]
      %v334 = vld [vmem:[%s280 + $0x40] sm:$0xff]
      %v335 = vld [vmem:[%s280 + $0x48] sm:$0xff]
      %v336 = vld [vmem:[%s280 + $0x50] sm:$0xff]
      %v337 = vld [vmem:[%s280 + $0x58] sm:$0xff]
      %v338 = vld [vmem:[%s280 + $0x60] sm:$0xff]
      %v339 = vld [vmem:[%s280 + $0x68] sm:$0xff]
      %v340 = vld [vmem:[%s280 + $0x70] sm:$0xff]
      %v341 = vld [vmem:[%s280 + $0x78] sm:$0xff]
      %342 = vmatprep.subr.mxu0 0.0
      %343 = vmatpush1.msra.mxu0 %v326
      %344 = vmatprep.subr.mxu0 0.0
      %345 = vmatpush1.msra.mxu0 %v327
      %346 = vmatprep.subr.mxu0 0.0
      %347 = vmatpush1.msra.mxu0 %v328
      %348 = vmatprep.subr.mxu0 0.0
      %349 = vmatpush1.msra.mxu0 %v329
      %350 = vmatprep.subr.mxu0 0.0
      %351 = vmatpush1.msra.mxu0 %v330
      %352 = vmatprep.subr.mxu0 0.0
      %353 = vmatpush1.msra.mxu0 %v331
      %354 = vmatprep.subr.mxu0 0.0
      %355 = vmatpush1.msra.mxu0 %v332
      %356 = vmatprep.subr.mxu0 0.0
      %357 = vmatpush1.msra.mxu0 %v333
      %358 = vmatprep.subr.mxu0 0.0
      %359 = vmatpush1.msra.mxu0 %v334
      %360 = vmatprep.subr.mxu0 0.0
      %361 = vmatpush1.msra.mxu0 %v335
      %362 = vmatprep.subr.mxu0 0.0
      %363 = vmatpush1.msra.mxu0 %v336
      %364 = vmatprep.subr.mxu0 0.0
      %365 = vmatpush1.msra.mxu0 %v337
      %366 = vmatprep.subr.mxu0 0.0
      %367 = vmatpush1.msra.mxu0 %v338
      %368 = vmatprep.subr.mxu0 0.0
      %369 = vmatpush1.msra.mxu0 %v339
      %370 = vmatprep.subr.mxu0 0.0
      %371 = vmatpush1.msra.mxu0 %v340
      %372 = vmatprep.subr.mxu0 0.0
      %373 = vmatpush1.msra.mxu0 %v341
      %374 = vmatprep.subr.mxu0 0.0
      %375 = vmatpush1.msra.mxu0 0.0
      %376 = vmatprep.subr.mxu0 0.0
      %377 = vmatpush1.msra.mxu0 0.0
      %378 = vmatprep.subr.mxu0 0.0
      %379 = vmatpush1.msra.mxu0 0.0
      %380 = vmatprep.subr.mxu0 0.0
      %381 = vmatpush1.msra.mxu0 0.0
      %382 = vmatprep.subr.mxu0 0.0
      %383 = vmatpush1.msra.mxu0 0.0
      %384 = vmatprep.subr.mxu0 0.0
      %385 = vmatpush1.msra.mxu0 0.0
      %386 = vmatprep.subr.mxu0 0.0
      %387 = vmatpush1.msra.mxu0 0.0
      %388 = vmatprep.subr.mxu0 0.0
      %389 = vmatpush1.msra.mxu0 0.0
      %390 = vmatprep.subr.mxu0 0.0
      %391 = vmatpush1.msra.mxu0 0.0
      %392 = vmatprep.subr.mxu0 0.0
      %393 = vmatpush1.msra.mxu0 0.0
      %394 = vmatprep.subr.mxu0 0.0
      %395 = vmatpush1.msra.mxu0 0.0
      %396 = vmatprep.subr.mxu0 0.0
      %397 = vmatpush1.msra.mxu0 0.0
      %398 = vmatprep.subr.mxu0 0.0
      %399 = vmatpush1.msra.mxu0 0.0
      %400 = vmatprep.subr.mxu0 0.0
      %401 = vmatpush1.msra.mxu0 0.0
      %402 = vmatprep.subr.mxu0 0.0
      %403 = vmatpush1.msra.mxu0 0.0
      %404 = vmatprep.subr.mxu0 0.0
      %405 = vmatpush1.msra.mxu0 0.0
      %406 = vmatprep.mubr.f32.mxu0 0.0
      %407 = vmatmul.mubr.f32.gmra.mrb[0].mxu0 %v310
      %v408 = vpop.f32.mrb[0].mxu0
      %v409 = vadd.f32 0.0, %v408
      %v410 = vpop.f32.mrb[0].mxu0
      %411 = vmatprep.mubr.f32.mxu0 0.0
      %412 = vmatmul.mubr.f32.gmra.mrb[0].mxu0 %v311
      %v413 = vpop.f32.mrb[0].mxu0
      %v414 = vadd.f32 0.0, %v413
      %v415 = vpop.f32.mrb[0].mxu0
      %416 = vmatprep.mubr.f32.mxu0 0.0
      %417 = vmatmul.mubr.f32.gmra.mrb[0].mxu0 %v312
      %v418 = vpop.f32.mrb[0].mxu0
      %v419 = vadd.f32 0.0, %v418
      %v420 = vpop.f32.mrb[0].mxu0
      %421 = vmatprep.mubr.f32.mxu0 0.0
      %422 = vmatmul.mubr.f32.gmra.mrb[0].mxu0 %v313
      %v423 = vpop.f32.mrb[0].mxu0
      %v424 = vadd.f32 0.0, %v423
      %v425 = vpop.f32.mrb[0].mxu0
      %426 = vmatprep.mubr.f32.mxu0 0.0
      %427 = vmatmul.mubr.f32.gmra.mrb[0].mxu0 %v314
      %v428 = vpop.f32.mrb[0].mxu0
      %v429 = vadd.f32 0.0, %v428
      %v430 = vpop.f32.mrb[0].mxu0
      %431 = vmatprep.mubr.f32.mxu0 0.0
      %432 = vmatmul.mubr.f32.gmra.mrb[0].mxu0 %v315
      %v433 = vpop.f32.mrb[0].mxu0
      %v434 = vadd.f32 0.0, %v433
      %v435 = vpop.f32.mrb[0].mxu0
      %436 = vmatprep.mubr.f32.mxu0 0.0
      %437 = vmatmul.mubr.f32.gmra.mrb[0].mxu0 %v316
      %v438 = vpop.f32.mrb[0].mxu0
      %v439 = vadd.f32 0.0, %v438
      %v440 = vpop.f32.mrb[0].mxu0
      %441 = vmatprep.mubr.f32.mxu0 0.0
      %442 = vmatmul.mubr.f32.gmra.mrb[0].mxu0 %v317
      %v443 = vpop.f32.mrb[0].mxu0
      %v444 = vadd.f32 0.0, %v443
      %v445 = vpop.f32.mrb[0].mxu0
      %446 = vmatprep.mubr.f32.mxu0 0.0
      %447 = vmatmul.mubr.f32.gmra.mrb[0].mxu0 %v318
      %v448 = vpop.f32.mrb[0].mxu0
      %v449 = vadd.f32 0.0, %v448
      %v450 = vpop.f32.mrb[0].mxu0
      %451 = vmatprep.mubr.f32.mxu0 0.0
      %452 = vmatmul.mubr.f32.gmra.mrb[0].mxu0 %v319
      %v453 = vpop.f32.mrb[0].mxu0
      %v454 = vadd.f32 0.0, %v453
      %v455 = vpop.f32.mrb[0].mxu0
      %456 = vmatprep.mubr.f32.mxu0 0.0
      %457 = vmatmul.mubr.f32.gmra.mrb[0].mxu0 %v320
      %v458 = vpop.f32.mrb[0].mxu0
      %v459 = vadd.f32 0.0, %v458
      %v460 = vpop.f32.mrb[0].mxu0
      %461 = vmatprep.mubr.f32.mxu0 0.0
      %462 = vmatmul.mubr.f32.gmra.mrb[0].mxu0 %v321
      %v463 = vpop.f32.mrb[0].mxu0
      %v464 = vadd.f32 0.0, %v463
      %v465 = vpop.f32.mrb[0].mxu0
      %466 = vmatprep.mubr.f32.mxu0 0.0
      %467 = vmatmul.mubr.f32.gmra.mrb[0].mxu0 %v322
      %v468 = vpop.f32.mrb[0].mxu0
      %v469 = vadd.f32 0.0, %v468
      %v470 = vpop.f32.mrb[0].mxu0
      %471 = vmatprep.mubr.f32.mxu0 0.0
      %472 = vmatmul.mubr.f32.gmra.mrb[0].mxu0 %v323
      %v473 = vpop.f32.mrb[0].mxu0
      %v474 = vadd.f32 0.0, %v473
      %v475 = vpop.f32.mrb[0].mxu0
      %476 = vmatprep.mubr.f32.mxu0 0.0
      %477 = vmatmul.mubr.f32.gmra.mrb[0].mxu0 %v324
      %v478 = vpop.f32.mrb[0].mxu0
      %v479 = vadd.f32 0.0, %v478
      %v480 = vpop.f32.mrb[0].mxu0
      %481 = vmatprep.mubr.f32.mxu0 0.0
      %482 = vmatmul.mubr.f32.gmra.mrb[0].mxu0 %v325
      %v483 = vpop.f32.mrb[0].mxu0
      %v484 = vadd.f32 0.0, %v483
      %v485 = vpop.f32.mrb[0].mxu0
      %486 = vdwg.mxu0
      %v487 = vld [vmem:[%s285] sm:$0xff]
      %v488 = vld [vmem:[%s285 + $0x8] sm:$0xff]
      %v489 = vld [vmem:[%s285 + $0x10] sm:$0xff]
      %v490 = vld [vmem:[%s285 + $0x18] sm:$0xff]
      %v491 = vld [vmem:[%s285 + $0x20] sm:$0xff]
      %v492 = vld [vmem:[%s285 + $0x28] sm:$0xff]
      %v493 = vld [vmem:[%s285 + $0x30] sm:$0xff]
      %v494 = vld [vmem:[%s285 + $0x38] sm:$0xff]
      %v495 = vld [vmem:[%s285 + $0x40] sm:$0xff]
      %v496 = vld [vmem:[%s285 + $0x48] sm:$0xff]
      %v497 = vld [vmem:[%s285 + $0x50] sm:$0xff]
      %v498 = vld [vmem:[%s285 + $0x58] sm:$0xff]
      %v499 = vld [vmem:[%s285 + $0x60] sm:$0xff]
      %v500 = vld [vmem:[%s285 + $0x68] sm:$0xff]
      %v501 = vld [vmem:[%s285 + $0x70] sm:$0xff]
      %v502 = vld [vmem:[%s285 + $0x78] sm:$0xff]
      %v503 = vld [vmem:[%s268] sm:$0xf]
      %v504 = vld [vmem:[%s268 + $0x4] sm:$0xf]
      %v505 = vld [vmem:[%s268 + $0x8] sm:$0xf]
      %v506 = vld [vmem:[%s268 + $0xc] sm:$0xf]
      %v507 = vld [vmem:[%s268 + $0x10] sm:$0xf]
      %v508 = vld [vmem:[%s268 + $0x14] sm:$0xf]
      %v509 = vld [vmem:[%s268 + $0x18] sm:$0xf]
      %v510 = vld [vmem:[%s268 + $0x1c] sm:$0xf]
      %v511 = vld [vmem:[%s268 + $0x20] sm:$0xf]
      %v512 = vld [vmem:[%s268 + $0x24] sm:$0xf]
      %v513 = vld [vmem:[%s268 + $0x28] sm:$0xf]
      %v514 = vld [vmem:[%s268 + $0x2c] sm:$0xf]
      %v515 = vld [vmem:[%s268 + $0x30] sm:$0xf]
      %v516 = vld [vmem:[%s268 + $0x34] sm:$0xf]
      %v517 = vld [vmem:[%s268 + $0x38] sm:$0xf]
      %v518 = vld [vmem:[%s268 + $0x3c] sm:$0xf]
      %v519 = vpack.c.bf16 %v414, %v409
      %v520 = vpack.c.bf16 %v424, %v419
      %v521 = vpack.c.bf16 %v434, %v429
      %v522 = vpack.c.bf16 %v444, %v439
      %v523 = vpack.c.bf16 %v454, %v449
      %v524 = vpack.c.bf16 %v464, %v459
      %v525 = vpack.c.bf16 %v474, %v469
      %v526 = vpack.c.bf16 %v484, %v479
      %v543 = vunpack.c.l.b16 %v503
      %v544 = vunpack.c.l.b16 %v504
      %v545 = vunpack.c.l.b16 %v505
      %v546 = vunpack.c.l.b16 %v506
      %v547 = vunpack.c.l.b16 %v507
      %v548 = vunpack.c.l.b16 %v508
      %v549 = vunpack.c.l.b16 %v509
      %v550 = vunpack.c.l.b16 %v510
      %v551 = vunpack.c.l.b16 %v511
      %v552 = vunpack.c.l.b16 %v512
      %v553 = vunpack.c.l.b16 %v513
      %v554 = vunpack.c.l.b16 %v514
      %v555 = vunpack.c.l.b16 %v515
      %v556 = vunpack.c.l.b16 %v516
      %v557 = vunpack.c.l.b16 %v517
      %v558 = vunpack.c.l.b16 %v518
      %v559 = vpack.c.b16 %v544, %v543
      %v560 = vpack.c.b16 %v546, %v545
      %v561 = vpack.c.b16 %v548, %v547
      %v562 = vpack.c.b16 %v550, %v549
      %v563 = vpack.c.b16 %v552, %v551
      %v564 = vpack.c.b16 %v554, %v553
      %v565 = vpack.c.b16 %v556, %v555
      %v566 = vpack.c.b16 %v558, %v557
      %575 = vmatprep.subr.bf16.mxu0 0
      %576 = vmatpush1.bf16.msra.mxu0 %v519
      %577 = vmatprep.subr.bf16.mxu0 0
      %578 = vmatpush1.bf16.msra.mxu0 %v520
      %579 = vmatprep.subr.bf16.mxu0 0
      %580 = vmatpush1.bf16.msra.mxu0 %v521
      %581 = vmatprep.subr.bf16.mxu0 0
      %582 = vmatpush1.bf16.msra.mxu0 %v522
      %583 = vmatprep.subr.bf16.mxu0 0
      %584 = vmatpush1.bf16.msra.mxu0 %v523
      %585 = vmatprep.subr.bf16.mxu0 0
      %586 = vmatpush1.bf16.msra.mxu0 %v524
      %587 = vmatprep.subr.bf16.mxu0 0
      %588 = vmatpush1.bf16.msra.mxu0 %v525
      %589 = vmatprep.subr.bf16.mxu0 0
      %590 = vmatpush1.bf16.msra.mxu0 %v526
      %591 = vmatprep.subr.bf16.mxu0 0
      %592 = vmatpush1.bf16.msra.mxu0 0
      %593 = vmatprep.subr.bf16.mxu0 0
      %594 = vmatpush1.bf16.msra.mxu0 0
      %595 = vmatprep.subr.bf16.mxu0 0
      %596 = vmatpush1.bf16.msra.mxu0 0
      %597 = vmatprep.subr.bf16.mxu0 0
      %598 = vmatpush1.bf16.msra.mxu0 0
      %599 = vmatprep.subr.bf16.mxu0 0
      %600 = vmatpush1.bf16.msra.mxu0 0
      %601 = vmatprep.subr.bf16.mxu0 0
      %602 = vmatpush1.bf16.msra.mxu0 0
      %603 = vmatprep.subr.bf16.mxu0 0
      %604 = vmatpush1.bf16.msra.mxu0 0
      %605 = vmatprep.subr.bf16.mxu0 0
      %606 = vmatpush1.bf16.msra.mxu0 0
      %607 = vmatprep.mubr.bf16.mxu0 0
      %608 = vmatmul.mubr.bf16.gmra.mrb[0].mxu0 %v559
      %v609 = vpop.f32.mrb[0].mxu0
      %v610 = vadd.f32 0.0, %v609
      %v611 = vpop.f32.mrb[0].mxu0
      %v612 = vpop.f32.mrb[0].mxu0
      %v613 = vadd.f32 0.0, %v612
      %v614 = vpop.f32.mrb[0].mxu0
      %615 = vmatprep.mubr.bf16.mxu0 0
      %616 = vmatmul.mubr.bf16.gmra.mrb[0].mxu0 %v560
      %v617 = vpop.f32.mrb[0].mxu0
      %v618 = vadd.f32 0.0, %v617
      %v619 = vpop.f32.mrb[0].mxu0
      %v620 = vpop.f32.mrb[0].mxu0
      %v621 = vadd.f32 0.0, %v620
      %v622 = vpop.f32.mrb[0].mxu0
      %623 = vmatprep.mubr.bf16.mxu0 0
      %624 = vmatmul.mubr.bf16.gmra.mrb[0].mxu0 %v561
      %v625 = vpop.f32.mrb[0].mxu0
      %v626 = vadd.f32 0.0, %v625
      %v627 = vpop.f32.mrb[0].mxu0
      %v628 = vpop.f32.mrb[0].mxu0
      %v629 = vadd.f32 0.0, %v628
      %v630 = vpop.f32.mrb[0].mxu0
      %631 = vmatprep.mubr.bf16.mxu0 0
      %632 = vmatmul.mubr.bf16.gmra.mrb[0].mxu0 %v562
      %v633 = vpop.f32.mrb[0].mxu0
      %v634 = vadd.f32 0.0, %v633
      %v635 = vpop.f32.mrb[0].mxu0
      %v636 = vpop.f32.mrb[0].mxu0
      %v637 = vadd.f32 0.0, %v636
      %v638 = vpop.f32.mrb[0].mxu0
      %639 = vmatprep.mubr.bf16.mxu0 0
      %640 = vmatmul.mubr.bf16.gmra.mrb[0].mxu0 %v563
      %v641 = vpop.f32.mrb[0].mxu0
      %v642 = vadd.f32 0.0, %v641
      %v643 = vpop.f32.mrb[0].mxu0
      %v644 = vpop.f32.mrb[0].mxu0
      %v645 = vadd.f32 0.0, %v644
      %v646 = vpop.f32.mrb[0].mxu0
      %647 = vmatprep.mubr.bf16.mxu0 0
      %648 = vmatmul.mubr.bf16.gmra.mrb[0].mxu0 %v564
      %v649 = vpop.f32.mrb[0].mxu0
      %v650 = vadd.f32 0.0, %v649
      %v651 = vpop.f32.mrb[0].mxu0
      %v652 = vpop.f32.mrb[0].mxu0
      %v653 = vadd.f32 0.0, %v652
      %v654 = vpop.f32.mrb[0].mxu0
      %655 = vmatprep.mubr.bf16.mxu0 0
      %656 = vmatmul.mubr.bf16.gmra.mrb[0].mxu0 %v565
      %v657 = vpop.f32.mrb[0].mxu0
      %v658 = vadd.f32 0.0, %v657
      %v659 = vpop.f32.mrb[0].mxu0
      %v660 = vpop.f32.mrb[0].mxu0
      %v661 = vadd.f32 0.0, %v660
      %v662 = vpop.f32.mrb[0].mxu0
      %663 = vmatprep.mubr.bf16.mxu0 0
      %664 = vmatmul.mubr.bf16.gmra.mrb[0].mxu0 %v566
      %v665 = vpop.f32.mrb[0].mxu0
      %v666 = vadd.f32 0.0, %v665
      %v667 = vpop.f32.mrb[0].mxu0
      %v668 = vpop.f32.mrb[0].mxu0
      %v669 = vadd.f32 0.0, %v668
      %v670 = vpop.f32.mrb[0].mxu0
      %671 = vdwg.mxu0
      %v672 = vadd.f32 %v487, %v610
      %v673 = vadd.f32 %v488, %v613
      %v674 = vadd.f32 %v489, %v618
      %v675 = vadd.f32 %v490, %v621
      %v676 = vadd.f32 %v491, %v626
      %v677 = vadd.f32 %v492, %v629
      %v678 = vadd.f32 %v493, %v634
      %v679 = vadd.f32 %v494, %v637
      %v680 = vadd.f32 %v495, %v642
      %v681 = vadd.f32 %v496, %v645
      %v682 = vadd.f32 %v497, %v650
      %v683 = vadd.f32 %v498, %v653
      %v684 = vadd.f32 %v499, %v658
      %v685 = vadd.f32 %v500, %v661
      %v686 = vadd.f32 %v501, %v666
      %v687 = vadd.f32 %v502, %v669
      %688 = vst [vmem:[%s285] sm:$0xff] %v672
      %689 = vst [vmem:[%s285 + $0x8] sm:$0xff] %v673
      %690 = vst [vmem:[%s285 + $0x10] sm:$0xff] %v674
      %691 = vst [vmem:[%s285 + $0x18] sm:$0xff] %v675
      %692 = vst [vmem:[%s285 + $0x20] sm:$0xff] %v676
      %693 = vst [vmem:[%s285 + $0x28] sm:$0xff] %v677
      %694 = vst [vmem:[%s285 + $0x30] sm:$0xff] %v678
      %695 = vst [vmem:[%s285 + $0x38] sm:$0xff] %v679
      %696 = vst [vmem:[%s285 + $0x40] sm:$0xff] %v680
      %697 = vst [vmem:[%s285 + $0x48] sm:$0xff] %v681
      %698 = vst [vmem:[%s285 + $0x50] sm:$0xff] %v682
      %699 = vst [vmem:[%s285 + $0x58] sm:$0xff] %v683
      %700 = vst [vmem:[%s285 + $0x60] sm:$0xff] %v684
      %701 = vst [vmem:[%s285 + $0x68] sm:$0xff] %v685
      %702 = vst [vmem:[%s285 + $0x70] sm:$0xff] %v686
      %703 = vst [vmem:[%s285 + $0x78] sm:$0xff] %v687
      %p704 = scmp.eq.s32.totalorder %s21, 1
      %p705 = pnand %p704, %p289
      %p706 = pneg %p705
      // Predicated region
      $region41: #{rgcn_forward.2} parent=35 // pred_check
        _
      $region42: #{rgcn_forward.2} parent=35 // pred_check_branch
        %708 = sbr.rel (%p705) target = $region44
      $region43: #{rgcn_forward.2} parent=35 // pred_region
        %v709 = vld [vmem:[%s285] sm:$0xff]
        %v710 = vld [vmem:[%s285 + $0x8] sm:$0xff]
        %v711 = vld [vmem:[%s285 + $0x10] sm:$0xff]
        %v712 = vld [vmem:[%s285 + $0x18] sm:$0xff]
        %v713 = vld [vmem:[%s285 + $0x20] sm:$0xff]
        %v714 = vld [vmem:[%s285 + $0x28] sm:$0xff]
        %v715 = vld [vmem:[%s285 + $0x30] sm:$0xff]
        %v716 = vld [vmem:[%s285 + $0x38] sm:$0xff]
        %v717 = vld [vmem:[%s285 + $0x40] sm:$0xff]
        %v718 = vld [vmem:[%s285 + $0x48] sm:$0xff]
        %v719 = vld [vmem:[%s285 + $0x50] sm:$0xff]
        %v720 = vld [vmem:[%s285 + $0x58] sm:$0xff]
        %v721 = vld [vmem:[%s285 + $0x60] sm:$0xff]
        %v722 = vld [vmem:[%s285 + $0x68] sm:$0xff]
        %v723 = vld [vmem:[%s285 + $0x70] sm:$0xff]
        %v724 = vld [vmem:[%s285 + $0x78] sm:$0xff]
        %v725 = vld [vmem:[%s3] sm:$0x1]
        %v727 = vlaneseq
        %v728 = vshrl.u32 %v727, 7
        %v729 = vsub.s32 0, %v728
        %v730 = vrot.slane %v725, %v729
        %v732 = vadd.f32 %v709, %v730
        %v733 = vadd.f32 %v710, %v730
        %v734 = vadd.f32 %v711, %v730
        %v735 = vadd.f32 %v712, %v730
        %v736 = vadd.f32 %v713, %v730
        %v737 = vadd.f32 %v714, %v730
        %v738 = vadd.f32 %v715, %v730
        %v739 = vadd.f32 %v716, %v730
        %v740 = vadd.f32 %v717, %v730
        %v741 = vadd.f32 %v718, %v730
        %v742 = vadd.f32 %v719, %v730
        %v743 = vadd.f32 %v720, %v730
        %v744 = vadd.f32 %v721, %v730
        %v745 = vadd.f32 %v722, %v730
        %v746 = vadd.f32 %v723, %v730
        %v747 = vadd.f32 %v724, %v730
        %v748 = vmax.f32 %v732, 0.0
        %v749 = vmax.f32 %v733, 0.0
        %v750 = vmax.f32 %v734, 0.0
        %v751 = vmax.f32 %v735, 0.0
        %v752 = vmax.f32 %v736, 0.0
        %v753 = vmax.f32 %v737, 0.0
        %v754 = vmax.f32 %v738, 0.0
        %v755 = vmax.f32 %v739, 0.0
        %v756 = vmax.f32 %v740, 0.0
        %v757 = vmax.f32 %v741, 0.0
        %v758 = vmax.f32 %v742, 0.0
        %v759 = vmax.f32 %v743, 0.0
        %v760 = vmax.f32 %v744, 0.0
        %v761 = vmax.f32 %v745, 0.0
        %v762 = vmax.f32 %v746, 0.0
        %v763 = vmax.f32 %v747, 0.0
        %764 = vst [vmem:[%s285] sm:$0xff] %v748
        %765 = vst [vmem:[%s285 + $0x8] sm:$0xff] %v749
        %766 = vst [vmem:[%s285 + $0x10] sm:$0xff] %v750
        %767 = vst [vmem:[%s285 + $0x18] sm:$0xff] %v751
        %768 = vst [vmem:[%s285 + $0x20] sm:$0xff] %v752
        %769 = vst [vmem:[%s285 + $0x28] sm:$0xff] %v753
        %770 = vst [vmem:[%s285 + $0x30] sm:$0xff] %v754
        %771 = vst [vmem:[%s285 + $0x38] sm:$0xff] %v755
        %772 = vst [vmem:[%s285 + $0x40] sm:$0xff] %v756
        %773 = vst [vmem:[%s285 + $0x48] sm:$0xff] %v757
        %774 = vst [vmem:[%s285 + $0x50] sm:$0xff] %v758
        %775 = vst [vmem:[%s285 + $0x58] sm:$0xff] %v759
        %776 = vst [vmem:[%s285 + $0x60] sm:$0xff] %v760
        %777 = vst [vmem:[%s285 + $0x68] sm:$0xff] %v761
        %778 = vst [vmem:[%s285 + $0x70] sm:$0xff] %v762
        %779 = vst [vmem:[%s285 + $0x78] sm:$0xff] %v763
      $region44: #{rgcn_forward.2} parent=35 // pred_fallthru
        _
      %s780 = smul.u32 16, %s20
      %p781 = scmp.lt.s32.totalorder %s780, 15
      %s782 = scalar_select %p781, %s780, 15
      %s783 = smul.addr %s782, 8
      %s784 = scalar_lea.vmem %s4, %s783
      // Predicated region
      $region45: #{rgcn_forward.2} parent=35 // pred_check
        %p785 = pneg %p155
      $region46: #{rgcn_forward.2} parent=35 // pred_check_branch
        %787 = sbr.rel (%p785) target = $region48
      $region47: #{rgcn_forward.2} parent=35 // pred_region
        %s788 = smul.u32 16, %s20
      $region48: #{rgcn_forward.2} parent=35 // pred_fallthru
        _
      // Predicated region
      $region49: #{rgcn_forward.2} parent=35 // pred_check
        %p789 = pneg %p155
      $region50: #{rgcn_forward.2} parent=35 // pred_check_branch
        %791 = sbr.rel (%p789) target = $region52
      $region51: #{rgcn_forward.2} parent=35 // pred_region
        %s792 = smul.u32 16, %s20
        %p793 = scmp.lt.s32.totalorder %s792, 15
        %s794 = scalar_select %p793, %s792, 15
        %s795 = smul.addr %s794, 8
        %s796 = scalar_lea.vmem %s4, %s795
      $region52: #{rgcn_forward.2} parent=35 // pred_fallthru
        _
    $region36: #{rgcn_forward.2} parent=5 // pred_fallthru
      _
    %p797 = scmp.le.s32.totalorder 2, %s10
    // Predicated region
    $region53: #{rgcn_forward.2} parent=5 // pred_check
      %p798 = pneg %p797
    $region54: #{rgcn_forward.2} parent=5 // pred_check_branch
      %800 = sbr.rel (%p798) target = $region56
    $region55: #{rgcn_forward.2} parent=5 // pred_region
      %s801 = ssub.s32 %s10, 2
    $region56: #{rgcn_forward.2} parent=5 // pred_fallthru
      _
  $region6: #{rgcn_forward.2} parent=0 // loop_footer
    %s14 = sadd.s32 1, %s10
  $region7: #{rgcn_forward.2} parent=0 // loop_footer_branch
    %9 = sbr.rel target = $region3
  $region8: #{rgcn_forward.2} parent=0 // loop_exit
    _

// kernel: rgcn_forward.3
$region0: #{rgcn_forward.3}
  #allocation0 [shape = 'u32[]', space=smem, size = 0x4, offset = 0x4, fixed_abs, tag = 'smem constant byte address 0x4 - core index']
  #allocation1 [shape = 'u32[144,128]{1,0:T(1,128)}', space=vmem, size = 0x12000, scoped, tag = 'internal scratch']
  %s0 = inlined_call_operand.vmem [shape: bf16[2,128,128], index: 0, kind: input, shape index: {}]
  %s1 = inlined_call_operand.vmem [shape: f32[128,128], index: 1, kind: input, shape index: {}]
  %s2 = inlined_call_operand.vmem [shape: f32[2,128,128], index: 2, kind: input, shape index: {}]
  %s3 = inlined_call_operand.vmem [shape: f32[1,128], index: 3, kind: input, shape index: {}]
  %s4 = inlined_call_operand.vmem [shape: f32[128,128], index: 4, kind: output, shape index: {}]
  %s5 = sld [smem:[#allocation0]]
  $region57: #{rgcn_forward.3} parent=0
    _
  %s7 = ssub.s32 1, %s5
  %s8 = scalar_select 0, %s7, %s5
  loop: start=0, step=1, limit=4
  $region2: #{rgcn_forward.3} parent=0 // loop_pre_header
    _
  $region3: #{rgcn_forward.3} parent=0 // loop_header
    %s10 = sphi 0, %s14
    %p11 = scmp.ge.s32.totalorder %s10, 4
    %s17 = sphi 0, %s36
    %s18 = sphi 0, %s32
    %s19 = sphi 0, %s28
    %s20 = sphi 0, %s17
    %s21 = sphi 0, %s18
    %s22 = sphi 0, %s19
    %s23 = sphi 0, %s20
    %s24 = sphi 0, %s21
    %s25 = sphi 0, %s22
    %s43 = sphi 0, %s45
    %s46 = sphi 0, %s43
    %s47 = sphi 0, %s46
    %s63 = sphi 0, %s47
    %s69 = sphi 0, %s71
    %s72 = sphi 0, %s69
    %s73 = sphi 0, %s72
    %s89 = sphi 0, %s73
    %s95 = sphi 0, %s97
    %s98 = sphi 0, %s95
    %s99 = sphi 0, %s98
    %s115 = sphi 0, %s99
    %s119 = sphi 0, %s119
    %s121 = sphi 0, %s119
    %s122 = sphi 0, %s121
    %s136 = sphi 0, %s122
    %s142 = sphi 0, %s144
    %s145 = sphi 0, %s142
    %s146 = sphi 0, %s145
    %s162 = sphi 0, %s146
  $region4: #{rgcn_forward.3} parent=0 // loop_header_branch
    %13 = sbr.rel (%p11) target = $region8
  $region5: #{rgcn_forward.3} parent=0 // loop_body
    %s15 = ssub.s32 %s10, 1
    %s16 = ssub.s32 %s10, 2
    %s26 = sadd.s32 1, %s19
    %p27 = scmp.ge.s32.totalorder %s26, 1
    %s28 = scalar_select %p27, 0, %s26
    %s29 = sadd.s32 1, %s18
    %s30 = scalar_select %p27, %s29, %s18
    %p31 = scmp.ge.s32.totalorder %s30, 2
    %s32 = scalar_select %p31, 0, %s30
    %s33 = sadd.s32 1, %s17
    %s34 = scalar_select %p31, %s33, %s17
    %p35 = scmp.ge.s32.totalorder %s34, 1
    %s36 = scalar_select %p35, 0, %s34
    %s37 = ssub.s32 %s18, %s32
    %s38 = ssub.s32 %s17, %s36
    %s39 = sor.u32 %s37, %s38
    %s40 = ssub.s32 %s19, %s28
    %s41 = sor.u32 %s39, %s40
    %p42 = scmp.eq.s32.totalorder %s41, 0
    %s44 = sadd.s32 %s43, 1
    %s45 = scalar_select %p42, %s43, %s44
    %p48 = pneg %p42
    %p49 = scmp.eq.s32.totalorder %s10, 1
    %p50 = por %p48, %p49
    %p51 = scmp.ne.s32.totalorder %s43, %s46
    %p52 = scmp.eq.s32.totalorder %s10, 0
    %p53 = por %p51, %p52
    %p54 = scmp.ne.s32.totalorder %s43, %s46
    %p55 = scmp.eq.s32.totalorder %s15, 1
    %p56 = por %p54, %p55
    %p57 = scmp.ne.s32.totalorder %s46, %s47
    %p58 = scmp.eq.s32.totalorder %s15, 0
    %p59 = por %p57, %p58
    %p60 = scmp.ne.s32.totalorder %s46, %s47
    %p61 = scmp.eq.s32.totalorder %s16, 1
    %p62 = por %p60, %p61
    %p64 = scmp.ne.s32.totalorder %s47, %s63
    %p65 = scmp.eq.s32.totalorder %s16, 0
    %p66 = por %p64, %p65
    %s67 = ssub.s32 %s19, %s28
    %p68 = scmp.eq.s32.totalorder %s67, 0
    %s70 = sadd.s32 %s69, 1
    %s71 = scalar_select %p68, %s69, %s70
    %p74 = pneg %p68
    %p75 = scmp.eq.s32.totalorder %s10, 1
    %p76 = por %p74, %p75
    %p77 = scmp.ne.s32.totalorder %s69, %s72
    %p78 = scmp.eq.s32.totalorder %s10, 0
    %p79 = por %p77, %p78
    %p80 = scmp.ne.s32.totalorder %s69, %s72
    %p81 = scmp.eq.s32.totalorder %s15, 1
    %p82 = por %p80, %p81
    %p83 = scmp.ne.s32.totalorder %s72, %s73
    %p84 = scmp.eq.s32.totalorder %s15, 0
    %p85 = por %p83, %p84
    %p86 = scmp.ne.s32.totalorder %s72, %s73
    %p87 = scmp.eq.s32.totalorder %s16, 1
    %p88 = por %p86, %p87
    %p90 = scmp.ne.s32.totalorder %s73, %s89
    %p91 = scmp.eq.s32.totalorder %s16, 0
    %p92 = por %p90, %p91
    %s93 = ssub.s32 %s18, %s32
    %p94 = scmp.eq.s32.totalorder %s93, 0
    %s96 = sadd.s32 %s95, 1
    %s97 = scalar_select %p94, %s95, %s96
    %p100 = pneg %p94
    %p101 = scmp.eq.s32.totalorder %s10, 1
    %p102 = por %p100, %p101
    %p103 = scmp.ne.s32.totalorder %s95, %s98
    %p104 = scmp.eq.s32.totalorder %s10, 0
    %p105 = por %p103, %p104
    %p106 = scmp.ne.s32.totalorder %s95, %s98
    %p107 = scmp.eq.s32.totalorder %s15, 1
    %p108 = por %p106, %p107
    %p109 = scmp.ne.s32.totalorder %s98, %s99
    %p110 = scmp.eq.s32.totalorder %s15, 0
    %p111 = por %p109, %p110
    %p112 = scmp.ne.s32.totalorder %s98, %s99
    %p113 = scmp.eq.s32.totalorder %s16, 1
    %p114 = por %p112, %p113
    %p116 = scmp.ne.s32.totalorder %s99, %s115
    %p117 = scmp.eq.s32.totalorder %s16, 0
    %p118 = por %p116, %p117
    %s120 = sadd.s32 %s119, 1
    %p123 = scmp.eq.s32.totalorder %s10, 1
    %p124 = scmp.ne.s32.totalorder %s119, %s121
    %p125 = scmp.eq.s32.totalorder %s10, 0
    %p126 = por %p124, %p125
    %p127 = scmp.ne.s32.totalorder %s119, %s121
    %p128 = scmp.eq.s32.totalorder %s15, 1
    %p129 = por %p127, %p128
    %p130 = scmp.ne.s32.totalorder %s121, %s122
    %p131 = scmp.eq.s32.totalorder %s15, 0
    %p132 = por %p130, %p131
    %p133 = scmp.ne.s32.totalorder %s121, %s122
    %p134 = scmp.eq.s32.totalorder %s16, 1
    %p135 = por %p133, %p134
    %p137 = scmp.ne.s32.totalorder %s122, %s136
    %p138 = scmp.eq.s32.totalorder %s16, 0
    %p139 = por %p137, %p138
    %s140 = ssub.s32 %s17, %s36
    %p141 = scmp.eq.s32.totalorder %s140, 0
    %s143 = sadd.s32 %s142, 1
    %s144 = scalar_select %p141, %s142, %s143
    %p147 = pneg %p141
    %p148 = scmp.eq.s32.totalorder %s10, 1
    %p149 = por %p147, %p148
    %p150 = scmp.ne.s32.totalorder %s142, %s145
    %p151 = scmp.eq.s32.totalorder %s10, 0
    %p152 = por %p150, %p151
    %p153 = scmp.ne.s32.totalorder %s142, %s145
    %p154 = scmp.eq.s32.totalorder %s15, 1
    %p155 = por %p153, %p154
    %p156 = scmp.ne.s32.totalorder %s145, %s146
    %p157 = scmp.eq.s32.totalorder %s15, 0
    %p158 = por %p156, %p157
    %p159 = scmp.ne.s32.totalorder %s145, %s146
    %p160 = scmp.eq.s32.totalorder %s16, 1
    %p161 = por %p159, %p160
    %p163 = scmp.ne.s32.totalorder %s146, %s162
    %p164 = scmp.eq.s32.totalorder %s16, 0
    %p165 = por %p163, %p164
    %p166 = scmp.le.s32.totalorder 1, %s10
    %p167 = scmp.lt.s32.totalorder %s10, 3
    %p168 = pnand %p166, %p167
    %p169 = pneg %p168
    // Predicated region
    $region9: #{rgcn_forward.3} parent=5 // pred_check
      _
    $region10: #{rgcn_forward.3} parent=5 // pred_check_branch
      %171 = sbr.rel (%p168) target = $region12
    $region11: #{rgcn_forward.3} parent=5 // pred_region
      %s172 = ssub.s32 %s10, 1
      // Predicated region
      $region13: #{rgcn_forward.3} parent=11 // pred_check
        %p173 = pneg %p85
      $region14: #{rgcn_forward.3} parent=11 // pred_check_branch
        %175 = sbr.rel (%p173) target = $region16
      $region15: #{rgcn_forward.3} parent=11 // pred_region
        %s176 = smul.u32 16, %s22
        %p177 = scmp.lt.s32.totalorder %s176, 15
        %s178 = scalar_select %p177, %s176, 15
        %s179 = smul.addr %s178, 8
        %s180 = scalar_lea.vmem %s1, %s179
        %s181 = smul.u32 16, %s22
      $region16: #{rgcn_forward.3} parent=11 // pred_fallthru
        _
      // Predicated region
      $region17: #{rgcn_forward.3} parent=11 // pred_check
        %p182 = pneg %p132
      $region18: #{rgcn_forward.3} parent=11 // pred_check_branch
        %184 = sbr.rel (%p182) target = $region20
      $region19: #{rgcn_forward.3} parent=11 // pred_region
        _
      $region20: #{rgcn_forward.3} parent=11 // pred_fallthru
        _
    $region12: #{rgcn_forward.3} parent=5 // pred_fallthru
      _
    %p185 = scmp.lt.s32.totalorder %s10, 2
    // Predicated region
    $region21: #{rgcn_forward.3} parent=5 // pred_check
      %p186 = pneg %p185
    $region22: #{rgcn_forward.3} parent=5 // pred_check_branch
      %188 = sbr.rel (%p186) target = $region24
    $region23: #{rgcn_forward.3} parent=5 // pred_region
      // Predicated region
      $region25: #{rgcn_forward.3} parent=23 // pred_check
        %p189 = pneg %p53
      $region26: #{rgcn_forward.3} parent=23 // pred_check_branch
        %191 = sbr.rel (%p189) target = $region28
      $region27: #{rgcn_forward.3} parent=23 // pred_region
        %s192 = smul.u32 16, %s17
        %p193 = scmp.lt.s32.totalorder %s18, 1
        %s194 = scalar_select %p193, %s18, 1
        %p195 = scmp.lt.s32.totalorder %s192, 15
        %s196 = scalar_select %p195, %s192, 15
        %p197 = scmp.lt.s32.totalorder %s19, 0
        %s198 = scalar_select %p197, %s19, 0
        %s199 = sadd.s32 %s198, %s196
        %s200 = smul.addr %s194, 16
        %s201 = sadd.s32 %s199, %s200
        %s202 = smul.addr %s201, 4
        %s203 = scalar_lea.vmem %s0, %s202
        %s204 = smul.u32 16, %s17
      $region28: #{rgcn_forward.3} parent=23 // pred_fallthru
        _
      // Predicated region
      $region29: #{rgcn_forward.3} parent=23 // pred_check
        %p205 = pneg %p105
      $region30: #{rgcn_forward.3} parent=23 // pred_check_branch
        %207 = sbr.rel (%p205) target = $region32
      $region31: #{rgcn_forward.3} parent=23 // pred_region
        %p208 = scmp.lt.s32.totalorder %s18, 1
        %s209 = scalar_select %p208, %s18, 1
        %s210 = smul.addr %s209, 16
        %s211 = smul.addr %s210, 8
        %s212 = scalar_lea.vmem %s2, %s211
      $region32: #{rgcn_forward.3} parent=23 // pred_fallthru
        _
    $region24: #{rgcn_forward.3} parent=5 // pred_fallthru
      _
    %p213 = scmp.le.s32.totalorder 1, %s10
    %p214 = scmp.lt.s32.totalorder %s10, 3
    %p215 = pnand %p213, %p214
    %p216 = pneg %p215
    // Predicated region
    $region33: #{rgcn_forward.3} parent=5 // pred_check
      _
    $region34: #{rgcn_forward.3} parent=5 // pred_check_branch
      %218 = sbr.rel (%p215) target = $region36
    $region35: #{rgcn_forward.3} parent=5 // pred_region
      %s219 = ssub.s32 %s10, 1
      %s220 = smul.u32 16, %s20
      %p221 = scmp.lt.s32.totalorder %s21, 1
      %s222 = scalar_select %p221, %s21, 1
      %p223 = scmp.lt.s32.totalorder %s220, 15
      %s224 = scalar_select %p223, %s220, 15
      %p225 = scmp.lt.s32.totalorder %s22, 0
      %s226 = scalar_select %p225, %s22, 0
      %s227 = sadd.s32 %s226, %s224
      %s228 = smul.addr %s222, 16
      %s229 = sadd.s32 %s227, %s228
      %s230 = smul.addr %s229, 4
      %s231 = scalar_lea.vmem %s0, %s230
      %p232 = pneg %p59
      %p233 = pneg %p56
      %s234 = smul.u32 16, %s22
      %p235 = scmp.lt.s32.totalorder %s234, 15
      %s236 = scalar_select %p235, %s234, 15
      %s237 = smul.addr %s236, 8
      %s238 = scalar_lea.vmem %s1, %s237
      %p239 = pneg %p85
      %p240 = pneg %p82
      %p241 = scmp.lt.s32.totalorder %s21, 1
      %s242 = scalar_select %p241, %s21, 1
      %s243 = smul.addr %s242, 16
      %s244 = smul.addr %s243, 8
      %s245 = scalar_lea.vmem %s2, %s244
      %p246 = pneg %p111
      %p247 = pneg %p108
      %p248 = pneg %p132
      %p249 = pneg %p129
      %p250 = pneg %p158
      %p251 = pneg %p155
      %s252 = smul.u32 16, %s20
      %p253 = scmp.lt.s32.totalorder %s252, 15
      %s254 = scalar_select %p253, %s252, 15
      %s255 = smul.addr %s254, 8
      %s256 = scalar_lea.vmem %s4, %s255
      %s257 = smul.u32 16, %s20
      %p258 = scmp.lt.s32.totalorder %s21, 1
      %s259 = scalar_select %p258, %s21, 1
      %p260 = scmp.lt.s32.totalorder %s257, 15
      %s261 = scalar_select %p260, %s257, 15
      %p262 = scmp.lt.s32.totalorder %s22, 0
      %s263 = scalar_select %p262, %s22, 0
      %s264 = sadd.s32 %s263, %s261
      %s265 = smul.addr %s259, 16
      %s266 = sadd.s32 %s264, %s265
      %s267 = smul.addr %s266, 4
      %s268 = scalar_lea.vmem %s0, %s267
      %s269 = smul.u32 16, %s20
      %s270 = smul.u32 16, %s22
      %p271 = scmp.lt.s32.totalorder %s270, 15
      %s272 = scalar_select %p271, %s270, 15
      %s273 = smul.addr %s272, 8
      %s274 = scalar_lea.vmem %s1, %s273
      %s275 = smul.u32 16, %s22
      %p276 = scmp.lt.s32.totalorder %s21, 1
      %s277 = scalar_select %p276, %s21, 1
      %s278 = smul.addr %s277, 16
      %s279 = smul.addr %s278, 8
      %s280 = scalar_lea.vmem %s2, %s279
      %s281 = smul.u32 16, %s20
      %p282 = scmp.lt.s32.totalorder %s281, 15
      %s283 = scalar_select %p282, %s281, 15
      %s284 = smul.addr %s283, 8
      %s285 = scalar_lea.vmem %s4, %s284
      %s286 = smul.u32 16, %s20
      %p288 = scmp.eq.s32.totalorder %s21, 0
      %p289 = scmp.eq.s32.totalorder %s22, 0
      %p290 = pnand %p288, %p289
      %p291 = pneg %p290
      // Predicated region
      $region37: #{rgcn_forward.3} parent=35 // pred_check
        _
      $region38: #{rgcn_forward.3} parent=35 // pred_check_branch
        %293 = sbr.rel (%p290) target = $region40
      $region39: #{rgcn_forward.3} parent=35 // pred_region
        %294 = vst [vmem:[%s285] sm:$0xff] 0.0
        %295 = vst [vmem:[%s285 + $0x8] sm:$0xff] 0.0
        %296 = vst [vmem:[%s285 + $0x10] sm:$0xff] 0.0
        %297 = vst [vmem:[%s285 + $0x18] sm:$0xff] 0.0
        %298 = vst [vmem:[%s285 + $0x20] sm:$0xff] 0.0
        %299 = vst [vmem:[%s285 + $0x28] sm:$0xff] 0.0
        %300 = vst [vmem:[%s285 + $0x30] sm:$0xff] 0.0
        %301 = vst [vmem:[%s285 + $0x38] sm:$0xff] 0.0
        %302 = vst [vmem:[%s285 + $0x40] sm:$0xff] 0.0
        %303 = vst [vmem:[%s285 + $0x48] sm:$0xff] 0.0
        %304 = vst [vmem:[%s285 + $0x50] sm:$0xff] 0.0
        %305 = vst [vmem:[%s285 + $0x58] sm:$0xff] 0.0
        %306 = vst [vmem:[%s285 + $0x60] sm:$0xff] 0.0
        %307 = vst [vmem:[%s285 + $0x68] sm:$0xff] 0.0
        %308 = vst [vmem:[%s285 + $0x70] sm:$0xff] 0.0
        %309 = vst [vmem:[%s285 + $0x78] sm:$0xff] 0.0
      $region40: #{rgcn_forward.3} parent=35 // pred_fallthru
        _
      %v310 = vld [vmem:[%s274] sm:$0xff]
      %v311 = vld [vmem:[%s274 + $0x8] sm:$0xff]
      %v312 = vld [vmem:[%s274 + $0x10] sm:$0xff]
      %v313 = vld [vmem:[%s274 + $0x18] sm:$0xff]
      %v314 = vld [vmem:[%s274 + $0x20] sm:$0xff]
      %v315 = vld [vmem:[%s274 + $0x28] sm:$0xff]
      %v316 = vld [vmem:[%s274 + $0x30] sm:$0xff]
      %v317 = vld [vmem:[%s274 + $0x38] sm:$0xff]
      %v318 = vld [vmem:[%s274 + $0x40] sm:$0xff]
      %v319 = vld [vmem:[%s274 + $0x48] sm:$0xff]
      %v320 = vld [vmem:[%s274 + $0x50] sm:$0xff]
      %v321 = vld [vmem:[%s274 + $0x58] sm:$0xff]
      %v322 = vld [vmem:[%s274 + $0x60] sm:$0xff]
      %v323 = vld [vmem:[%s274 + $0x68] sm:$0xff]
      %v324 = vld [vmem:[%s274 + $0x70] sm:$0xff]
      %v325 = vld [vmem:[%s274 + $0x78] sm:$0xff]
      %v326 = vld [vmem:[%s280] sm:$0xff]
      %v327 = vld [vmem:[%s280 + $0x8] sm:$0xff]
      %v328 = vld [vmem:[%s280 + $0x10] sm:$0xff]
      %v329 = vld [vmem:[%s280 + $0x18] sm:$0xff]
      %v330 = vld [vmem:[%s280 + $0x20] sm:$0xff]
      %v331 = vld [vmem:[%s280 + $0x28] sm:$0xff]
      %v332 = vld [vmem:[%s280 + $0x30] sm:$0xff]
      %v333 = vld [vmem:[%s280 + $0x38] sm:$0xff]
      %v334 = vld [vmem:[%s280 + $0x40] sm:$0xff]
      %v335 = vld [vmem:[%s280 + $0x48] sm:$0xff]
      %v336 = vld [vmem:[%s280 + $0x50] sm:$0xff]
      %v337 = vld [vmem:[%s280 + $0x58] sm:$0xff]
      %v338 = vld [vmem:[%s280 + $0x60] sm:$0xff]
      %v339 = vld [vmem:[%s280 + $0x68] sm:$0xff]
      %v340 = vld [vmem:[%s280 + $0x70] sm:$0xff]
      %v341 = vld [vmem:[%s280 + $0x78] sm:$0xff]
      %342 = vmatprep.subr.mxu0 0.0
      %343 = vmatpush1.msra.mxu0 %v326
      %344 = vmatprep.subr.mxu0 0.0
      %345 = vmatpush1.msra.mxu0 %v327
      %346 = vmatprep.subr.mxu0 0.0
      %347 = vmatpush1.msra.mxu0 %v328
      %348 = vmatprep.subr.mxu0 0.0
      %349 = vmatpush1.msra.mxu0 %v329
      %350 = vmatprep.subr.mxu0 0.0
      %351 = vmatpush1.msra.mxu0 %v330
      %352 = vmatprep.subr.mxu0 0.0
      %353 = vmatpush1.msra.mxu0 %v331
      %354 = vmatprep.subr.mxu0 0.0
      %355 = vmatpush1.msra.mxu0 %v332
      %356 = vmatprep.subr.mxu0 0.0
      %357 = vmatpush1.msra.mxu0 %v333
      %358 = vmatprep.subr.mxu0 0.0
      %359 = vmatpush1.msra.mxu0 %v334
      %360 = vmatprep.subr.mxu0 0.0
      %361 = vmatpush1.msra.mxu0 %v335
      %362 = vmatprep.subr.mxu0 0.0
      %363 = vmatpush1.msra.mxu0 %v336
      %364 = vmatprep.subr.mxu0 0.0
      %365 = vmatpush1.msra.mxu0 %v337
      %366 = vmatprep.subr.mxu0 0.0
      %367 = vmatpush1.msra.mxu0 %v338
      %368 = vmatprep.subr.mxu0 0.0
      %369 = vmatpush1.msra.mxu0 %v339
      %370 = vmatprep.subr.mxu0 0.0
      %371 = vmatpush1.msra.mxu0 %v340
      %372 = vmatprep.subr.mxu0 0.0
      %373 = vmatpush1.msra.mxu0 %v341
      %374 = vmatprep.subr.mxu0 0.0
      %375 = vmatpush1.msra.mxu0 0.0
      %376 = vmatprep.subr.mxu0 0.0
      %377 = vmatpush1.msra.mxu0 0.0
      %378 = vmatprep.subr.mxu0 0.0
      %379 = vmatpush1.msra.mxu0 0.0
      %380 = vmatprep.subr.mxu0 0.0
      %381 = vmatpush1.msra.mxu0 0.0
      %382 = vmatprep.subr.mxu0 0.0
      %383 = vmatpush1.msra.mxu0 0.0
      %384 = vmatprep.subr.mxu0 0.0
      %385 = vmatpush1.msra.mxu0 0.0
      %386 = vmatprep.subr.mxu0 0.0
      %387 = vmatpush1.msra.mxu0 0.0
      %388 = vmatprep.subr.mxu0 0.0
      %389 = vmatpush1.msra.mxu0 0.0
      %390 = vmatprep.subr.mxu0 0.0
      %391 = vmatpush1.msra.mxu0 0.0
      %392 = vmatprep.subr.mxu0 0.0
      %393 = vmatpush1.msra.mxu0 0.0
      %394 = vmatprep.subr.mxu0 0.0
      %395 = vmatpush1.msra.mxu0 0.0
      %396 = vmatprep.subr.mxu0 0.0
      %397 = vmatpush1.msra.mxu0 0.0
      %398 = vmatprep.subr.mxu0 0.0
      %399 = vmatpush1.msra.mxu0 0.0
      %400 = vmatprep.subr.mxu0 0.0
      %401 = vmatpush1.msra.mxu0 0.0
      %402 = vmatprep.subr.mxu0 0.0
      %403 = vmatpush1.msra.mxu0 0.0
      %404 = vmatprep.subr.mxu0 0.0
      %405 = vmatpush1.msra.mxu0 0.0
      %406 = vmatprep.mubr.f32.mxu0 0.0
      %407 = vmatmul.mubr.f32.gmra.mrb[0].mxu0 %v310
      %v408 = vpop.f32.mrb[0].mxu0
      %v409 = vadd.f32 0.0, %v408
      %v410 = vpop.f32.mrb[0].mxu0
      %411 = vmatprep.mubr.f32.mxu0 0.0
      %412 = vmatmul.mubr.f32.gmra.mrb[0].mxu0 %v311
      %v413 = vpop.f32.mrb[0].mxu0
      %v414 = vadd.f32 0.0, %v413
      %v415 = vpop.f32.mrb[0].mxu0
      %416 = vmatprep.mubr.f32.mxu0 0.0
      %417 = vmatmul.mubr.f32.gmra.mrb[0].mxu0 %v312
      %v418 = vpop.f32.mrb[0].mxu0
      %v419 = vadd.f32 0.0, %v418
      %v420 = vpop.f32.mrb[0].mxu0
      %421 = vmatprep.mubr.f32.mxu0 0.0
      %422 = vmatmul.mubr.f32.gmra.mrb[0].mxu0 %v313
      %v423 = vpop.f32.mrb[0].mxu0
      %v424 = vadd.f32 0.0, %v423
      %v425 = vpop.f32.mrb[0].mxu0
      %426 = vmatprep.mubr.f32.mxu0 0.0
      %427 = vmatmul.mubr.f32.gmra.mrb[0].mxu0 %v314
      %v428 = vpop.f32.mrb[0].mxu0
      %v429 = vadd.f32 0.0, %v428
      %v430 = vpop.f32.mrb[0].mxu0
      %431 = vmatprep.mubr.f32.mxu0 0.0
      %432 = vmatmul.mubr.f32.gmra.mrb[0].mxu0 %v315
      %v433 = vpop.f32.mrb[0].mxu0
      %v434 = vadd.f32 0.0, %v433
      %v435 = vpop.f32.mrb[0].mxu0
      %436 = vmatprep.mubr.f32.mxu0 0.0
      %437 = vmatmul.mubr.f32.gmra.mrb[0].mxu0 %v316
      %v438 = vpop.f32.mrb[0].mxu0
      %v439 = vadd.f32 0.0, %v438
      %v440 = vpop.f32.mrb[0].mxu0
      %441 = vmatprep.mubr.f32.mxu0 0.0
      %442 = vmatmul.mubr.f32.gmra.mrb[0].mxu0 %v317
      %v443 = vpop.f32.mrb[0].mxu0
      %v444 = vadd.f32 0.0, %v443
      %v445 = vpop.f32.mrb[0].mxu0
      %446 = vmatprep.mubr.f32.mxu0 0.0
      %447 = vmatmul.mubr.f32.gmra.mrb[0].mxu0 %v318
      %v448 = vpop.f32.mrb[0].mxu0
      %v449 = vadd.f32 0.0, %v448
      %v450 = vpop.f32.mrb[0].mxu0
      %451 = vmatprep.mubr.f32.mxu0 0.0
      %452 = vmatmul.mubr.f32.gmra.mrb[0].mxu0 %v319
      %v453 = vpop.f32.mrb[0].mxu0
      %v454 = vadd.f32 0.0, %v453
      %v455 = vpop.f32.mrb[0].mxu0
      %456 = vmatprep.mubr.f32.mxu0 0.0
      %457 = vmatmul.mubr.f32.gmra.mrb[0].mxu0 %v320
      %v458 = vpop.f32.mrb[0].mxu0
      %v459 = vadd.f32 0.0, %v458
      %v460 = vpop.f32.mrb[0].mxu0
      %461 = vmatprep.mubr.f32.mxu0 0.0
      %462 = vmatmul.mubr.f32.gmra.mrb[0].mxu0 %v321
      %v463 = vpop.f32.mrb[0].mxu0
      %v464 = vadd.f32 0.0, %v463
      %v465 = vpop.f32.mrb[0].mxu0
      %466 = vmatprep.mubr.f32.mxu0 0.0
      %467 = vmatmul.mubr.f32.gmra.mrb[0].mxu0 %v322
      %v468 = vpop.f32.mrb[0].mxu0
      %v469 = vadd.f32 0.0, %v468
      %v470 = vpop.f32.mrb[0].mxu0
      %471 = vmatprep.mubr.f32.mxu0 0.0
      %472 = vmatmul.mubr.f32.gmra.mrb[0].mxu0 %v323
      %v473 = vpop.f32.mrb[0].mxu0
      %v474 = vadd.f32 0.0, %v473
      %v475 = vpop.f32.mrb[0].mxu0
      %476 = vmatprep.mubr.f32.mxu0 0.0
      %477 = vmatmul.mubr.f32.gmra.mrb[0].mxu0 %v324
      %v478 = vpop.f32.mrb[0].mxu0
      %v479 = vadd.f32 0.0, %v478
      %v480 = vpop.f32.mrb[0].mxu0
      %481 = vmatprep.mubr.f32.mxu0 0.0
      %482 = vmatmul.mubr.f32.gmra.mrb[0].mxu0 %v325
      %v483 = vpop.f32.mrb[0].mxu0
      %v484 = vadd.f32 0.0, %v483
      %v485 = vpop.f32.mrb[0].mxu0
      %486 = vdwg.mxu0
      %v487 = vld [vmem:[%s285] sm:$0xff]
      %v488 = vld [vmem:[%s285 + $0x8] sm:$0xff]
      %v489 = vld [vmem:[%s285 + $0x10] sm:$0xff]
      %v490 = vld [vmem:[%s285 + $0x18] sm:$0xff]
      %v491 = vld [vmem:[%s285 + $0x20] sm:$0xff]
      %v492 = vld [vmem:[%s285 + $0x28] sm:$0xff]
      %v493 = vld [vmem:[%s285 + $0x30] sm:$0xff]
      %v494 = vld [vmem:[%s285 + $0x38] sm:$0xff]
      %v495 = vld [vmem:[%s285 + $0x40] sm:$0xff]
      %v496 = vld [vmem:[%s285 + $0x48] sm:$0xff]
      %v497 = vld [vmem:[%s285 + $0x50] sm:$0xff]
      %v498 = vld [vmem:[%s285 + $0x58] sm:$0xff]
      %v499 = vld [vmem:[%s285 + $0x60] sm:$0xff]
      %v500 = vld [vmem:[%s285 + $0x68] sm:$0xff]
      %v501 = vld [vmem:[%s285 + $0x70] sm:$0xff]
      %v502 = vld [vmem:[%s285 + $0x78] sm:$0xff]
      %v503 = vld [vmem:[%s268] sm:$0xf]
      %v504 = vld [vmem:[%s268 + $0x4] sm:$0xf]
      %v505 = vld [vmem:[%s268 + $0x8] sm:$0xf]
      %v506 = vld [vmem:[%s268 + $0xc] sm:$0xf]
      %v507 = vld [vmem:[%s268 + $0x10] sm:$0xf]
      %v508 = vld [vmem:[%s268 + $0x14] sm:$0xf]
      %v509 = vld [vmem:[%s268 + $0x18] sm:$0xf]
      %v510 = vld [vmem:[%s268 + $0x1c] sm:$0xf]
      %v511 = vld [vmem:[%s268 + $0x20] sm:$0xf]
      %v512 = vld [vmem:[%s268 + $0x24] sm:$0xf]
      %v513 = vld [vmem:[%s268 + $0x28] sm:$0xf]
      %v514 = vld [vmem:[%s268 + $0x2c] sm:$0xf]
      %v515 = vld [vmem:[%s268 + $0x30] sm:$0xf]
      %v516 = vld [vmem:[%s268 + $0x34] sm:$0xf]
      %v517 = vld [vmem:[%s268 + $0x38] sm:$0xf]
      %v518 = vld [vmem:[%s268 + $0x3c] sm:$0xf]
      %v519 = vpack.c.bf16 %v414, %v409
      %v520 = vpack.c.bf16 %v424, %v419
      %v521 = vpack.c.bf16 %v434, %v429
      %v522 = vpack.c.bf16 %v444, %v439
      %v523 = vpack.c.bf16 %v454, %v449
      %v524 = vpack.c.bf16 %v464, %v459
      %v525 = vpack.c.bf16 %v474, %v469
      %v526 = vpack.c.bf16 %v484, %v479
      %v543 = vunpack.c.l.b16 %v503
      %v544 = vunpack.c.l.b16 %v504
      %v545 = vunpack.c.l.b16 %v505
      %v546 = vunpack.c.l.b16 %v506
      %v547 = vunpack.c.l.b16 %v507
      %v548 = vunpack.c.l.b16 %v508
      %v549 = vunpack.c.l.b16 %v509
      %v550 = vunpack.c.l.b16 %v510
      %v551 = vunpack.c.l.b16 %v511
      %v552 = vunpack.c.l.b16 %v512
      %v553 = vunpack.c.l.b16 %v513
      %v554 = vunpack.c.l.b16 %v514
      %v555 = vunpack.c.l.b16 %v515
      %v556 = vunpack.c.l.b16 %v516
      %v557 = vunpack.c.l.b16 %v517
      %v558 = vunpack.c.l.b16 %v518
      %v559 = vpack.c.b16 %v544, %v543
      %v560 = vpack.c.b16 %v546, %v545
      %v561 = vpack.c.b16 %v548, %v547
      %v562 = vpack.c.b16 %v550, %v549
      %v563 = vpack.c.b16 %v552, %v551
      %v564 = vpack.c.b16 %v554, %v553
      %v565 = vpack.c.b16 %v556, %v555
      %v566 = vpack.c.b16 %v558, %v557
      %575 = vmatprep.subr.bf16.mxu0 0
      %576 = vmatpush1.bf16.msra.mxu0 %v519
      %577 = vmatprep.subr.bf16.mxu0 0
      %578 = vmatpush1.bf16.msra.mxu0 %v520
      %579 = vmatprep.subr.bf16.mxu0 0
      %580 = vmatpush1.bf16.msra.mxu0 %v521
      %581 = vmatprep.subr.bf16.mxu0 0
      %582 = vmatpush1.bf16.msra.mxu0 %v522
      %583 = vmatprep.subr.bf16.mxu0 0
      %584 = vmatpush1.bf16.msra.mxu0 %v523
      %585 = vmatprep.subr.bf16.mxu0 0
      %586 = vmatpush1.bf16.msra.mxu0 %v524
      %587 = vmatprep.subr.bf16.mxu0 0
      %588 = vmatpush1.bf16.msra.mxu0 %v525
      %589 = vmatprep.subr.bf16.mxu0 0
      %590 = vmatpush1.bf16.msra.mxu0 %v526
      %591 = vmatprep.subr.bf16.mxu0 0
      %592 = vmatpush1.bf16.msra.mxu0 0
      %593 = vmatprep.subr.bf16.mxu0 0
      %594 = vmatpush1.bf16.msra.mxu0 0
      %595 = vmatprep.subr.bf16.mxu0 0
      %596 = vmatpush1.bf16.msra.mxu0 0
      %597 = vmatprep.subr.bf16.mxu0 0
      %598 = vmatpush1.bf16.msra.mxu0 0
      %599 = vmatprep.subr.bf16.mxu0 0
      %600 = vmatpush1.bf16.msra.mxu0 0
      %601 = vmatprep.subr.bf16.mxu0 0
      %602 = vmatpush1.bf16.msra.mxu0 0
      %603 = vmatprep.subr.bf16.mxu0 0
      %604 = vmatpush1.bf16.msra.mxu0 0
      %605 = vmatprep.subr.bf16.mxu0 0
      %606 = vmatpush1.bf16.msra.mxu0 0
      %607 = vmatprep.mubr.bf16.mxu0 0
      %608 = vmatmul.mubr.bf16.gmra.mrb[0].mxu0 %v559
      %v609 = vpop.f32.mrb[0].mxu0
      %v610 = vadd.f32 0.0, %v609
      %v611 = vpop.f32.mrb[0].mxu0
      %v612 = vpop.f32.mrb[0].mxu0
      %v613 = vadd.f32 0.0, %v612
      %v614 = vpop.f32.mrb[0].mxu0
      %615 = vmatprep.mubr.bf16.mxu0 0
      %616 = vmatmul.mubr.bf16.gmra.mrb[0].mxu0 %v560
      %v617 = vpop.f32.mrb[0].mxu0
      %v618 = vadd.f32 0.0, %v617
      %v619 = vpop.f32.mrb[0].mxu0
      %v620 = vpop.f32.mrb[0].mxu0
      %v621 = vadd.f32 0.0, %v620
      %v622 = vpop.f32.mrb[0].mxu0
      %623 = vmatprep.mubr.bf16.mxu0 0
      %624 = vmatmul.mubr.bf16.gmra.mrb[0].mxu0 %v561
      %v625 = vpop.f32.mrb[0].mxu0
      %v626 = vadd.f32 0.0, %v625
      %v627 = vpop.f32.mrb[0].mxu0
      %v628 = vpop.f32.mrb[0].mxu0
      %v629 = vadd.f32 0.0, %v628
      %v630 = vpop.f32.mrb[0].mxu0
      %631 = vmatprep.mubr.bf16.mxu0 0
      %632 = vmatmul.mubr.bf16.gmra.mrb[0].mxu0 %v562
      %v633 = vpop.f32.mrb[0].mxu0
      %v634 = vadd.f32 0.0, %v633
      %v635 = vpop.f32.mrb[0].mxu0
      %v636 = vpop.f32.mrb[0].mxu0
      %v637 = vadd.f32 0.0, %v636
      %v638 = vpop.f32.mrb[0].mxu0
      %639 = vmatprep.mubr.bf16.mxu0 0
      %640 = vmatmul.mubr.bf16.gmra.mrb[0].mxu0 %v563
      %v641 = vpop.f32.mrb[0].mxu0
      %v642 = vadd.f32 0.0, %v641
      %v643 = vpop.f32.mrb[0].mxu0
      %v644 = vpop.f32.mrb[0].mxu0
      %v645 = vadd.f32 0.0, %v644
      %v646 = vpop.f32.mrb[0].mxu0
      %647 = vmatprep.mubr.bf16.mxu0 0
      %648 = vmatmul.mubr.bf16.gmra.mrb[0].mxu0 %v564
      %v649 = vpop.f32.mrb[0].mxu0
      %v650 = vadd.f32 0.0, %v649
      %v651 = vpop.f32.mrb[0].mxu0
      %v652 = vpop.f32.mrb[0].mxu0
      %v653 = vadd.f32 0.0, %v652
      %v654 = vpop.f32.mrb[0].mxu0
      %655 = vmatprep.mubr.bf16.mxu0 0
      %656 = vmatmul.mubr.bf16.gmra.mrb[0].mxu0 %v565
      %v657 = vpop.f32.mrb[0].mxu0
      %v658 = vadd.f32 0.0, %v657
      %v659 = vpop.f32.mrb[0].mxu0
      %v660 = vpop.f32.mrb[0].mxu0
      %v661 = vadd.f32 0.0, %v660
      %v662 = vpop.f32.mrb[0].mxu0
      %663 = vmatprep.mubr.bf16.mxu0 0
      %664 = vmatmul.mubr.bf16.gmra.mrb[0].mxu0 %v566
      %v665 = vpop.f32.mrb[0].mxu0
      %v666 = vadd.f32 0.0, %v665
      %v667 = vpop.f32.mrb[0].mxu0
      %v668 = vpop.f32.mrb[0].mxu0
      %v669 = vadd.f32 0.0, %v668
      %v670 = vpop.f32.mrb[0].mxu0
      %671 = vdwg.mxu0
      %v672 = vadd.f32 %v487, %v610
      %v673 = vadd.f32 %v488, %v613
      %v674 = vadd.f32 %v489, %v618
      %v675 = vadd.f32 %v490, %v621
      %v676 = vadd.f32 %v491, %v626
      %v677 = vadd.f32 %v492, %v629
      %v678 = vadd.f32 %v493, %v634
      %v679 = vadd.f32 %v494, %v637
      %v680 = vadd.f32 %v495, %v642
      %v681 = vadd.f32 %v496, %v645
      %v682 = vadd.f32 %v497, %v650
      %v683 = vadd.f32 %v498, %v653
      %v684 = vadd.f32 %v499, %v658
      %v685 = vadd.f32 %v500, %v661
      %v686 = vadd.f32 %v501, %v666
      %v687 = vadd.f32 %v502, %v669
      %688 = vst [vmem:[%s285] sm:$0xff] %v672
      %689 = vst [vmem:[%s285 + $0x8] sm:$0xff] %v673
      %690 = vst [vmem:[%s285 + $0x10] sm:$0xff] %v674
      %691 = vst [vmem:[%s285 + $0x18] sm:$0xff] %v675
      %692 = vst [vmem:[%s285 + $0x20] sm:$0xff] %v676
      %693 = vst [vmem:[%s285 + $0x28] sm:$0xff] %v677
      %694 = vst [vmem:[%s285 + $0x30] sm:$0xff] %v678
      %695 = vst [vmem:[%s285 + $0x38] sm:$0xff] %v679
      %696 = vst [vmem:[%s285 + $0x40] sm:$0xff] %v680
      %697 = vst [vmem:[%s285 + $0x48] sm:$0xff] %v681
      %698 = vst [vmem:[%s285 + $0x50] sm:$0xff] %v682
      %699 = vst [vmem:[%s285 + $0x58] sm:$0xff] %v683
      %700 = vst [vmem:[%s285 + $0x60] sm:$0xff] %v684
      %701 = vst [vmem:[%s285 + $0x68] sm:$0xff] %v685
      %702 = vst [vmem:[%s285 + $0x70] sm:$0xff] %v686
      %703 = vst [vmem:[%s285 + $0x78] sm:$0xff] %v687
      %p704 = scmp.eq.s32.totalorder %s21, 1
      %p705 = pnand %p704, %p289
      %p706 = pneg %p705
      // Predicated region
      $region41: #{rgcn_forward.3} parent=35 // pred_check
        _
      $region42: #{rgcn_forward.3} parent=35 // pred_check_branch
        %708 = sbr.rel (%p705) target = $region44
      $region43: #{rgcn_forward.3} parent=35 // pred_region
        %v709 = vld [vmem:[%s285] sm:$0xff]
        %v710 = vld [vmem:[%s285 + $0x8] sm:$0xff]
        %v711 = vld [vmem:[%s285 + $0x10] sm:$0xff]
        %v712 = vld [vmem:[%s285 + $0x18] sm:$0xff]
        %v713 = vld [vmem:[%s285 + $0x20] sm:$0xff]
        %v714 = vld [vmem:[%s285 + $0x28] sm:$0xff]
        %v715 = vld [vmem:[%s285 + $0x30] sm:$0xff]
        %v716 = vld [vmem:[%s285 + $0x38] sm:$0xff]
        %v717 = vld [vmem:[%s285 + $0x40] sm:$0xff]
        %v718 = vld [vmem:[%s285 + $0x48] sm:$0xff]
        %v719 = vld [vmem:[%s285 + $0x50] sm:$0xff]
        %v720 = vld [vmem:[%s285 + $0x58] sm:$0xff]
        %v721 = vld [vmem:[%s285 + $0x60] sm:$0xff]
        %v722 = vld [vmem:[%s285 + $0x68] sm:$0xff]
        %v723 = vld [vmem:[%s285 + $0x70] sm:$0xff]
        %v724 = vld [vmem:[%s285 + $0x78] sm:$0xff]
        %v725 = vld [vmem:[%s3] sm:$0x1]
        %v727 = vlaneseq
        %v728 = vshrl.u32 %v727, 7
        %v729 = vsub.s32 0, %v728
        %v730 = vrot.slane %v725, %v729
        %v732 = vadd.f32 %v709, %v730
        %v733 = vadd.f32 %v710, %v730
        %v734 = vadd.f32 %v711, %v730
        %v735 = vadd.f32 %v712, %v730
        %v736 = vadd.f32 %v713, %v730
        %v737 = vadd.f32 %v714, %v730
        %v738 = vadd.f32 %v715, %v730
        %v739 = vadd.f32 %v716, %v730
        %v740 = vadd.f32 %v717, %v730
        %v741 = vadd.f32 %v718, %v730
        %v742 = vadd.f32 %v719, %v730
        %v743 = vadd.f32 %v720, %v730
        %v744 = vadd.f32 %v721, %v730
        %v745 = vadd.f32 %v722, %v730
        %v746 = vadd.f32 %v723, %v730
        %v747 = vadd.f32 %v724, %v730
        %748 = vst [vmem:[%s285] sm:$0xff] %v732
        %749 = vst [vmem:[%s285 + $0x8] sm:$0xff] %v733
        %750 = vst [vmem:[%s285 + $0x10] sm:$0xff] %v734
        %751 = vst [vmem:[%s285 + $0x18] sm:$0xff] %v735
        %752 = vst [vmem:[%s285 + $0x20] sm:$0xff] %v736
        %753 = vst [vmem:[%s285 + $0x28] sm:$0xff] %v737
        %754 = vst [vmem:[%s285 + $0x30] sm:$0xff] %v738
        %755 = vst [vmem:[%s285 + $0x38] sm:$0xff] %v739
        %756 = vst [vmem:[%s285 + $0x40] sm:$0xff] %v740
        %757 = vst [vmem:[%s285 + $0x48] sm:$0xff] %v741
        %758 = vst [vmem:[%s285 + $0x50] sm:$0xff] %v742
        %759 = vst [vmem:[%s285 + $0x58] sm:$0xff] %v743
        %760 = vst [vmem:[%s285 + $0x60] sm:$0xff] %v744
        %761 = vst [vmem:[%s285 + $0x68] sm:$0xff] %v745
        %762 = vst [vmem:[%s285 + $0x70] sm:$0xff] %v746
        %763 = vst [vmem:[%s285 + $0x78] sm:$0xff] %v747
      $region44: #{rgcn_forward.3} parent=35 // pred_fallthru
        _
      %s764 = smul.u32 16, %s20
      %p765 = scmp.lt.s32.totalorder %s764, 15
      %s766 = scalar_select %p765, %s764, 15
      %s767 = smul.addr %s766, 8
      %s768 = scalar_lea.vmem %s4, %s767
      // Predicated region
      $region45: #{rgcn_forward.3} parent=35 // pred_check
        %p769 = pneg %p155
      $region46: #{rgcn_forward.3} parent=35 // pred_check_branch
        %771 = sbr.rel (%p769) target = $region48
      $region47: #{rgcn_forward.3} parent=35 // pred_region
        %s772 = smul.u32 16, %s20
      $region48: #{rgcn_forward.3} parent=35 // pred_fallthru
        _
      // Predicated region
      $region49: #{rgcn_forward.3} parent=35 // pred_check
        %p773 = pneg %p155
      $region50: #{rgcn_forward.3} parent=35 // pred_check_branch
        %775 = sbr.rel (%p773) target = $region52
      $region51: #{rgcn_forward.3} parent=35 // pred_region
        %s776 = smul.u32 16, %s20
        %p777 = scmp.lt.s32.totalorder %s776, 15
        %s778 = scalar_select %p777, %s776, 15
        %s779 = smul.addr %s778, 8
        %s780 = scalar_lea.vmem %s4, %s779
      $region52: #{rgcn_forward.3} parent=35 // pred_fallthru
        _
    $region36: #{rgcn_forward.3} parent=5 // pred_fallthru
      _
    %p781 = scmp.le.s32.totalorder 2, %s10
    // Predicated region
    $region53: #{rgcn_forward.3} parent=5 // pred_check
      %p782 = pneg %p781
    $region54: #{rgcn_forward.3} parent=5 // pred_check_branch
      %784 = sbr.rel (%p782) target = $region56
    $region55: #{rgcn_forward.3} parent=5 // pred_region
      %s785 = ssub.s32 %s10, 2
    $region56: #{rgcn_forward.3} parent=5 // pred_fallthru
      _
  $region6: #{rgcn_forward.3} parent=0 // loop_footer
    %s14 = sadd.s32 1, %s10
  $region7: #{rgcn_forward.3} parent=0 // loop_footer_branch
    %9 = sbr.rel target = $region3
  $region8: #{rgcn_forward.3} parent=0 // loop_exit
    _

</llo_original>
